<compile_context>
chip_gen: v7x
topology: tpu7x:2x2x1
jax: 0.10.0
libtpu: 0.0.40
codegen_flags: <defaults>
</compile_context>

<pallas_src>
import numpy as np

import jax
import jax.numpy as jnp
from jax.experimental import pallas as pl
from jax.experimental.pallas import tpu as pltpu

# ----------------------------- model config ---------------------------------
IN_CH = 3
FEAT_CH = 8                       # synthetic encoder out_dim
NUM_FREQ = 7                      # floor(log2(1/(2*2/512))) = 7 (nyquist rule)
NPE = 4 * NUM_FREQ                # 28 sin/cos phases
H1 = 64                           # imnet hidden sizes (synthetic imnet_spec)
H2 = 64
OUT_DIM = 3
OUT_SUB = 8                       # sublane-padded output rows (rows >= 3 zero)
ENC_K = 32                        # im2col rows (27) padded to a clean 32


def _round_up(x, m):
    return ((x + m - 1) // m) * m


def _cdiv(a, b):
    return (a + b - 1) // b


def _pick_tile(n, t):
    """Clamp tile to n (128-rounded); prefer >=2 grid steps (v7x megacore)."""
    t = min(t, _round_up(n, 128))
    if n > 128 and _cdiv(n, t) < 2:
        t = max(128, _round_up(_cdiv(n, 2), 128))
    return t


# ----------------------- Pallas kernel: encoder conv -------------------------
def _encoder_kernel(xt_ref, wt_ref, b_ref, o_ref):
    # xt: (K, tm) bf16 im2col columns, wt: (Cout, K) bf16, b: (Cout, 1) f32
    # -> o: (Cout, tm) bf16 (pixels lane-dense)
    o_ref[...] = (
        jnp.dot(wt_ref[...], xt_ref[...], preferred_element_type=jnp.float32)
        + b_ref[...]
    ).astype(o_ref.dtype)


def pallas_conv_encoder(xt, wt, b, tm=8192):
    """(Cout, K) @ (K, M) + b, tiled over M (pixels on the lane axis)."""
    K, M = xt.shape
    Cout, Kw = wt.shape
    assert K == Kw
    tm = _pick_tile(M, tm)
    Mp = _round_up(M, tm)
    if Mp != M:
        xt = jnp.pad(xt, ((0, 0), (0, Mp - M)))
    out = pl.pallas_call(
        _encoder_kernel,
        out_shape=jax.ShapeDtypeStruct((Cout, Mp), jnp.bfloat16),
        grid=(Mp // tm,),
        in_specs=[
            pl.BlockSpec((K, tm), lambda i: (0, i)),
            pl.BlockSpec((Cout, K), lambda i: (0, 0)),
            pl.BlockSpec((Cout, 1), lambda i: (0, 0)),
        ],
        out_specs=pl.BlockSpec((Cout, tm), lambda i: (0, i)),
        compiler_params=pltpu.CompilerParams(
            dimension_semantics=("parallel",)),
    )(xt, wt, b)
    return out[:, :M]


# --------------- Pallas kernel: imnet MLP + local-ensemble sum ---------------
def _imnet_ensemble_kernel(qf_ref, relw_ref, pe_ref,
                           w1q_ref, w1r_ref, w1p_ref,
                           w2h_ref, w2r_ref, w2p_ref,
                           w3_ref, bias_ref,
                           out_ref, acc_ref):
    b = pl.program_id(1)              # local-ensemble branch (reduction axis)

    @pl.when(b == 0)
    def _():
        acc_ref[...] = jnp.zeros_like(acc_ref)

    qf = qf_ref[0]                    # (72, tn) bf16 — pixels on the lane axis
    relw = relw_ref[0]                # (3, tn)  f32 : [rel0; rel1; weight]
    rel = relw[0:2, :]                # (2, tn)
    wgt = relw[2:3, :]                # (1, tn)

    # PosEncoding_sin: all 28 phases with one K=2 selector matmul + one sin
    # (cos(x) = sin(x + pi/2) folded into the phase-bias column). f32 phases.
    pe_par = pe_ref[...]              # (28, 3): cols 0-1 selector, col 2 bias
    phases = (jnp.dot(pe_par[:, 0:2], rel, preferred_element_type=jnp.float32)
              + pe_par[:, 2:3])
    pe = jnp.sin(phases)              # (28, tn) f32
    pe_b = pe.astype(jnp.bfloat16)

    bias = bias_ref[...]              # (H1+H2+8, 1) f32, packed b1|b2|b3
    b1 = bias[0:H1, :]
    b2 = bias[H1:H1 + H2, :]
    b3 = bias[H1 + H2:, :]

    # layer 1 (transposed): q_feat path (bf16 MXU), rel path (K=2), PE (bf16)
    h1 = (jnp.dot(w1q_ref[...], qf, preferred_element_type=jnp.float32)
          + jnp.dot(w1r_ref[...], rel, preferred_element_type=jnp.float32)
          + jnp.dot(w1p_ref[...], pe_b, preferred_element_type=jnp.float32)
          + b1)
    h1 = jnp.maximum(h1, 0.0)

    # layer 2: re-inject rel_coord_ (UltraSR imnet takes it as a 2nd argument)
    h2 = (jnp.dot(w2h_ref[...], h1.astype(jnp.bfloat16),
                  preferred_element_type=jnp.float32)
          + jnp.dot(w2r_ref[...], rel, preferred_element_type=jnp.float32)
          + jnp.dot(w2p_ref[...], pe_b, preferred_element_type=jnp.float32)
          + b2)
    h2 = jnp.maximum(h2, 0.0)

    # layer 3: (8, H2) @ (H2, tn) -> lane-dense (8, tn); rows >= 3 are zero
    pred = jnp.dot(w3_ref[...], h2, preferred_element_type=jnp.float32) + b3
    acc_ref[...] += pred * wgt        # weighted ensemble accumulate, 8 vregs/tn

    @pl.when(b == pl.num_programs(1) - 1)
    def _():
        out_ref[...] = acc_ref[...]   # one lane-dense (8, tn) store per tile


def imnet_ensemble(qf, relw, params, tn=8192):
    """qf: (4, 72, N) bf16, relw: (4, 3, N) f32 -> (OUT_DIM, N) f32."""
    nb, c9, N = qf.shape
    tn = _pick_tile(N, tn)
    Np = _round_up(N, tn)
    if Np != N:
        pad = Np - N
        qf = jnp.pad(qf, ((0, 0), (0, 0), (0, pad)))
        relw = jnp.pad(relw, ((0, 0), (0, 0), (0, pad)))   # wgt = 0 on padding

    dmap = lambda i, b: (b, 0, i)
    wmap = lambda i, b: (0, 0)

    out = pl.pallas_call(
        _imnet_ensemble_kernel,
        out_shape=jax.ShapeDtypeStruct((OUT_SUB, Np), jnp.float32),
        grid=(Np // tn, nb),
        in_specs=[
            pl.BlockSpec((1, c9, tn), dmap),        # q_feat (bf16, lane-dense)
            pl.BlockSpec((1, 3, tn), dmap),         # rel coords + ensemble wgt
            pl.BlockSpec((NPE, 3), wmap),           # PE selector + phase bias
            pl.BlockSpec((H1, c9), wmap),           # w1 (q_feat block, bf16)
            pl.BlockSpec((H1, 2), wmap),            # w1 (rel block, f32)
            pl.BlockSpec((H1, NPE), wmap),          # w1 (PE block, bf16)
            pl.BlockSpec((H2, H1), wmap),           # w2 (hidden block, bf16)
            pl.BlockSpec((H2, 2), wmap),            # w2 (rel block, f32)
            pl.BlockSpec((H2, NPE), wmap),          # w2 (PE block, bf16)
            pl.BlockSpec((OUT_SUB, H2), wmap),      # w3 (sublane padded)
            pl.BlockSpec((H1 + H2 + OUT_SUB, 1), wmap),   # biases b1|b2|b3
        ],
        out_specs=pl.BlockSpec((OUT_SUB, tn), lambda i, b: (0, i)),
        scratch_shapes=[pltpu.VMEM((OUT_SUB, tn), jnp.float32)],
        compiler_params=pltpu.CompilerParams(
            dimension_semantics=("parallel", "arbitrary")),
    )(
        qf, relw, params["pe_par"],
        params["w1_qf"], params["w1_rel"], params["w1_pe"],
        params["w2_h"], params["w2_rel"], params["w2_pe"],
        params["w3p"], params["biases"],
    )
    return out[:OUT_DIM, :N]


# ------------------------------- JAX glue ------------------------------------
def unfold3x3_to_cols(x_nhwc, k_pad=ENC_K):
    """im2col for a 3x3 conv with zero padding, emitted as (K, B*H*W) bf16 so
    the Pallas encoder reads/writes lane-dense pixel columns. Row order is
    c*9 + ky*3 + kx; rows 27..31 are zero padding."""
    B, H, W, C = x_nhwc.shape
    xp = jnp.pad(x_nhwc.astype(jnp.bfloat16), ((0, 0), (1, 1), (1, 1), (0, 0)))
    rows = []
    for c in range(C):
        for ky in range(3):
            for kx in range(3):
                rows.append(xp[:, ky:ky + H, kx:kx + W, c].reshape(-1))
    cols = jnp.stack(rows, axis=0)
    if k_pad > len(rows):
        cols = jnp.pad(cols, ((0, k_pad - len(rows)), (0, 0)))
    return cols


def query_rgb(feat_cbhw, coord, params, tn=8192):
    C, B, H, W = feat_cbhw.shape
    # zero-padded channel-major feature map: the 9 unfold taps are gathered
    # directly from it instead of materializing the 9x F.unfold intermediate.
    featp = jnp.pad(feat_cbhw, ((0, 0), (0, 0), (1, 1), (1, 1)))
    _, Q, _ = coord.shape
    N = B * Q

    rx = 1.0 / H                                      # 2 / H / 2
    ry = 1.0 / W
    eps = 1e-6
    bidx = jnp.arange(B)[:, None]

    # TODO(synk): the per-pixel 9-tap gather below is still an XLA gather that
    # materializes qf in HBM; fusing it into the imnet kernel needs in-kernel
    # dynamic gather / per-pixel DMA, left out to keep lowering risk low.
    qf_list, rel_list, area_list = [], [], []
    for vx in (-1, 1):                                # PyTorch loop order
        for vy in (-1, 1):
            cy = jnp.clip(coord[..., 0] + vx * rx + eps, -1 + 1e-6, 1 - 1e-6)
            cx = jnp.clip(coord[..., 1] + vy * ry + eps, -1 + 1e-6, 1 - 1e-6)
            # grid_sample(mode='nearest', align_corners=False): round(((c+1)*n-1)/2)
            iy = jnp.clip(jnp.round(((cy + 1.0) * H - 1.0) / 2.0).astype(jnp.int32), 0, H - 1)
            ix = jnp.clip(jnp.round(((cx + 1.0) * W - 1.0) / 2.0).astype(jnp.int32), 0, W - 1)
            taps = [featp[:, bidx, iy + ky, ix + kx]             # (C, B, Q)
                    for ky in range(3) for kx in range(3)]
            q_feat = jnp.stack(taps, axis=1).reshape(C * 9, N)   # row = c*9+k
            qy = -1.0 + (2.0 * iy.astype(jnp.float32) + 1.0) / H     # make_coord
            qx = -1.0 + (2.0 * ix.astype(jnp.float32) + 1.0) / W
            rel0 = (coord[..., 0] - qy) * H
            rel1 = (coord[..., 1] - qx) * W
            area = jnp.abs(rel0 * rel1) + 1e-9
            qf_list.append(q_feat)
            rel_list.append(jnp.stack([rel0.reshape(N), rel1.reshape(N)], axis=0))
            area_list.append(area.reshape(N))

    areas = jnp.stack(area_list)                       # (4, N)
    tot = jnp.sum(areas, axis=0)
    wgts = areas[::-1] / tot[None, :]                  # swap 0<->3, 1<->2

    qf = jnp.stack(qf_list).astype(jnp.bfloat16)                   # (4, 72, N)
    relw = jnp.concatenate([jnp.stack(rel_list),
                            wgts[:, None, :]], axis=1)             # (4, 3, N)

    out = imnet_ensemble(qf, relw, params, tn=tn)      # (3, N)
    return out.T.reshape(B, Q, OUT_DIM)


def ultrasr_forward(params, inp_nchw, coord, cell=None):
    # cell_decode=False -> `cell` is unused (matches module defaults).
    B, C, H, W = inp_nchw.shape
    x = jnp.transpose(inp_nchw, (0, 2, 3, 1))          # NCHW -> NHWC
    # TODO(synk): encoder_spec is an external config in the original; a
    # synthetic single 3x3 conv encoder (XLA im2col + Pallas matmul) is used
    # here. Fusing the im2col halo into the kernel is a further traffic cut.
    cols = unfold3x3_to_cols(x)                        # (32, B*H*W) bf16
    feat_t = pallas_conv_encoder(cols, params["enc_wt"], params["enc_b"])
    feat = feat_t.reshape(FEAT_CH, B, H, W)            # channel-major, no .T
    return query_rgb(feat, coord, params)


# --------------------------- deterministic params ----------------------------
def init_params(key):
    ks = jax.random.split(key, 16)

    def nrm(k, shape, scale=0.05):
        return (scale * jax.random.normal(k, shape)).astype(jnp.float32)

    nf = NUM_FREQ
    freqs = np.pi * (2.0 ** np.arange(nf, dtype=np.float32))
    # PE selector (transposed): phases = sel @ rel + pbias ; pe = sin(phases).
    #   rows [0:7)  = sin(rel0*f), [7:14)  = cos(rel0*f)  (phase +pi/2),
    #        [14:21)= sin(rel1*f), [21:28) = cos(rel1*f).
    pe_par = np.zeros((NPE, 3), np.float32)
    pe_par[0:nf, 0] = freqs
    pe_par[nf:2 * nf, 0] = freqs
    pe_par[nf:2 * nf, 2] = np.pi / 2.0
    pe_par[2 * nf:3 * nf, 1] = freqs
    pe_par[3 * nf:4 * nf, 1] = freqs
    pe_par[3 * nf:4 * nf, 2] = np.pi / 2.0
    pe_par = jnp.asarray(pe_par)

    b1 = nrm(ks[6], (H1,))
    b2 = nrm(ks[7], (H2,))
    b3 = nrm(ks[8], (OUT_DIM,))
    biases = jnp.zeros((H1 + H2 + OUT_SUB, 1), jnp.float32)
    biases = (biases.at[0:H1, 0].set(b1)
                    .at[H1:H1 + H2, 0].set(b2)
                    .at[H1 + H2:H1 + H2 + OUT_DIM, 0].set(b3))

    w3 = nrm(ks[9], (OUT_DIM, H2))
    w3p = jnp.zeros((OUT_SUB, H2), jnp.float32).at[:OUT_DIM].set(w3)

    return {
        # extra im2col pad rows (27..31) are zero, so padded weight cols are inert
        "enc_wt": nrm(ks[0], (FEAT_CH, ENC_K)).astype(jnp.bfloat16),
        "enc_b": nrm(ks[1], (FEAT_CH, 1)),
        "pe_par": pe_par,
        # TODO(synk): imnet_spec is external in the original; synthetic 3-layer
        # MLP (in = 72 q_feat + 30 rel/PE -> 64 -> 64 -> 3) with rel_coord_
        # re-injection at layer 2, weights stored transposed per concat block.
        "w1_qf": nrm(ks[2], (H1, FEAT_CH * 9)).astype(jnp.bfloat16),
        "w1_rel": nrm(ks[3], (H1, 2)),
        "w1_pe": nrm(ks[10], (H1, NPE)).astype(jnp.bfloat16),
        "w2_h": nrm(ks[4], (H2, H1)).astype(jnp.bfloat16),
        "w2_rel": nrm(ks[5], (H2, 2)),
        "w2_pe": nrm(ks[11], (H2, NPE)).astype(jnp.bfloat16),
        "biases": biases,
        "w3p": w3p,
    }


# ---------------------------------- main --------------------------------------
if __name__ == "__main__":
    params = init_params(jax.random.PRNGKey(0))

    B, H, W, Q = 2, 16, 16, 64
    k_inp, k_coord = jax.random.split(jax.random.PRNGKey(0))
    inp = jax.random.normal(k_inp, (B, IN_CH, H, W), dtype=jnp.float32)
    coord = jax.random.uniform(
        k_coord, (B, Q, 2), minval=-1.0, maxval=1.0, dtype=jnp.float32)

    fwd = jax.jit(ultrasr_forward)
    out = jax.block_until_ready(fwd(params, inp, coord))

    assert out.shape == (B, Q, OUT_DIM), out.shape
    assert bool(jnp.all(jnp.isfinite(out)))
    print("KERNEL_OK")
</pallas_src>

<mosaic_0001>
module attributes {stable_mosaic.version = 11 : i64} {
  func.func @_encoder_kernel(%arg0: i32, %arg1: memref<32x256xbf16, #tpu.memory_space<vmem>>, %arg2: memref<8x32xbf16, #tpu.memory_space<vmem>>, %arg3: memref<8x1xf32, #tpu.memory_space<vmem>>, %arg4: memref<8x256xbf16, #tpu.memory_space<vmem>>) attributes {dimension_semantics = [#tpu.dimension_semantics<parallel>], iteration_bounds = array<i64: 2>, scalar_prefetch = 0 : i64, scratch_operands = 0 : i64, tpu.core_type = #tpu.core_type<tc>, window_params = [{transform_indices = @transform_0, window_bounds = array<i64: 32, 256>}, {pipeline_mode = #tpu.pipeline_mode<synchronous>, transform_indices = @transform_1, window_bounds = array<i64: 8, 32>}, {pipeline_mode = #tpu.pipeline_mode<synchronous>, transform_indices = @transform_2, window_bounds = array<i64: 8, 1>}, {transform_indices = @transform_3, window_bounds = array<i64: 8, 256>}]} {
    %c0 = arith.constant 0 : index
    %c0_0 = arith.constant 0 : index
    %0 = vector.load %arg2[%c0, %c0_0] : memref<8x32xbf16, #tpu.memory_space<vmem>>, vector<8x32xbf16>
    %c0_1 = arith.constant 0 : index
    %c0_2 = arith.constant 0 : index
    %1 = vector.load %arg1[%c0_1, %c0_2] : memref<32x256xbf16, #tpu.memory_space<vmem>>, vector<32x256xbf16>
    %cst = arith.constant dense<0.000000e+00> : vector<8x256xf32>
    %2 = tpu.matmul %0, %1, %cst {dimension_numbers = #tpu.dot_dimension_numbers<[1], [0], [0], [1], [0, 0, 1, 1], [], []>} : vector<8x32xbf16>, vector<32x256xbf16>, vector<8x256xf32> -> vector<8x256xf32>
    %c0_3 = arith.constant 0 : index
    %c0_4 = arith.constant 0 : index
    %3 = vector.load %arg3[%c0_3, %c0_4] : memref<8x1xf32, #tpu.memory_space<vmem>>, vector<8x1xf32>
    %4 = vector.broadcast %3 : vector<8x1xf32> to vector<8x256xf32>
    %5 = arith.addf %2, %4 : vector<8x256xf32>
    %6 = arith.truncf %5 : vector<8x256xf32> to vector<8x256xbf16>
    %c0_5 = arith.constant 0 : index
    %c0_6 = arith.constant 0 : index
    %7 = vector.load %arg4[%c0_5, %c0_6] : memref<8x256xbf16, #tpu.memory_space<vmem>>, vector<8x256xbf16>
    tpu.vector_store %arg4[%c0_5, %c0_6], %6 {strides = array<i32>} : memref<8x256xbf16, #tpu.memory_space<vmem>>, vector<8x256xbf16>,
    return
  }
  func.func @transform_0(%arg0: i32) -> (i32, i32) {
    %c0_i32 = arith.constant 0 : i32
    %c0_i32_0 = arith.constant 0 : i32
    return %c0_i32, %arg0 : i32, i32
  }
  func.func @transform_1(%arg0: i32) -> (i32, i32) {
    %c0_i32 = arith.constant 0 : i32
    %c0_i32_0 = arith.constant 0 : i32
    %c0_i32_1 = arith.constant 0 : i32
    return %c0_i32, %c0_i32_0 : i32, i32
  }
  func.func @transform_2(%arg0: i32) -> (i32, i32) {
    %c0_i32 = arith.constant 0 : i32
    %c0_i32_0 = arith.constant 0 : i32
    %c0_i32_1 = arith.constant 0 : i32
    return %c0_i32, %c0_i32_0 : i32, i32
  }
  func.func @transform_3(%arg0: i32) -> (i32, i32) {
    %c0_i32 = arith.constant 0 : i32
    %c0_i32_0 = arith.constant 0 : i32
    return %c0_i32, %arg0 : i32, i32
  }
}

module attributes {stable_mosaic.version = 11 : i64} {
  func.func @_imnet_ensemble_kernel(%arg0: i32, %arg1: i32, %arg2: memref<1x72x128xbf16, #tpu.memory_space<vmem>>, %arg3: memref<1x3x128xf32, #tpu.memory_space<vmem>>, %arg4: memref<28x3xf32, #tpu.memory_space<vmem>>, %arg5: memref<64x72xbf16, #tpu.memory_space<vmem>>, %arg6: memref<64x2xf32, #tpu.memory_space<vmem>>, %arg7: memref<64x28xbf16, #tpu.memory_space<vmem>>, %arg8: memref<64x64xbf16, #tpu.memory_space<vmem>>, %arg9: memref<64x2xf32, #tpu.memory_space<vmem>>, %arg10: memref<64x28xbf16, #tpu.memory_space<vmem>>, %arg11: memref<8x64xf32, #tpu.memory_space<vmem>>, %arg12: memref<136x1xf32, #tpu.memory_space<vmem>>, %arg13: memref<8x128xf32, #tpu.memory_space<vmem>>, %arg14: memref<8x128xf32, #tpu.memory_space<vmem>>) attributes {dimension_semantics = [#tpu.dimension_semantics<parallel>, #tpu.dimension_semantics<arbitrary>], iteration_bounds = array<i64: 1, 4>, scalar_prefetch = 0 : i64, scratch_operands = 1 : i64, tpu.core_type = #tpu.core_type<tc>, window_params = [{transform_indices = @transform_0, window_bounds = array<i64: 1, 72, 128>}, {transform_indices = @transform_1, window_bounds = array<i64: 1, 3, 128>}, {pipeline_mode = #tpu.pipeline_mode<synchronous>, transform_indices = @transform_2, window_bounds = array<i64: 28, 3>}, {pipeline_mode = #tpu.pipeline_mode<synchronous>, transform_indices = @transform_3, window_bounds = array<i64: 64, 72>}, {pipeline_mode = #tpu.pipeline_mode<synchronous>, transform_indices = @transform_4, window_bounds = array<i64: 64, 2>}, {pipeline_mode = #tpu.pipeline_mode<synchronous>, transform_indices = @transform_5, window_bounds = array<i64: 64, 28>}, {pipeline_mode = #tpu.pipeline_mode<synchronous>, transform_indices = @transform_6, window_bounds = array<i64: 64, 64>}, {pipeline_mode = #tpu.pipeline_mode<synchronous>, transform_indices = @transform_7, window_bounds = array<i64: 64, 2>}, {pipeline_mode = #tpu.pipeline_mode<synchronous>, transform_indices = @transform_8, window_bounds = array<i64: 64, 28>}, {pipeline_mode = #tpu.pipeline_mode<synchronous>, transform_indices = @transform_9, window_bounds = array<i64: 8, 64>}, {pipeline_mode = #tpu.pipeline_mode<synchronous>, transform_indices = @transform_10, window_bounds = array<i64: 136, 1>}, {transform_indices = @transform_11, window_bounds = array<i64: 8, 128>}]} {
    %c0_i32 = arith.constant 0 : i32
    %0 = arith.cmpi eq, %arg1, %c0_i32 : i32
    %1 = arith.extui %0 : i1 to i32
    %c0_i32_0 = arith.constant 0 : i32
    %2 = arith.cmpi ne, %1, %c0_i32_0 : i32
    scf.if %2 {
      %cst_38 = arith.constant 0.000000e+00 : f32
      %58 = vector.broadcast %cst_38 : f32 to vector<8x128xf32>
      %c0_39 = arith.constant 0 : index
      %c0_40 = arith.constant 0 : index
      %59 = vector.load %arg14[%c0_39, %c0_40] : memref<8x128xf32, #tpu.memory_space<vmem>>, vector<8x128xf32>
      tpu.vector_store %arg14[%c0_39, %c0_40], %58 {strides = array<i32>} : memref<8x128xf32, #tpu.memory_space<vmem>>, vector<8x128xf32>,
    } else {
    }
    %c0 = arith.constant 0 : index
    %c0_1 = arith.constant 0 : index
    %c0_2 = arith.constant 0 : index
    %3 = vector.load %arg2[%c0, %c0_1, %c0_2] : memref<1x72x128xbf16, #tpu.memory_space<vmem>>, vector<1x72x128xbf16>
    %4 = vector.shape_cast %3 : vector<1x72x128xbf16> to vector<72x128xbf16>
    %c0_3 = arith.constant 0 : index
    %c0_4 = arith.constant 0 : index
    %c0_5 = arith.constant 0 : index
    %5 = vector.load %arg3[%c0_3, %c0_4, %c0_5] : memref<1x3x128xf32, #tpu.memory_space<vmem>>, vector<1x3x128xf32>
    %6 = vector.shape_cast %5 : vector<1x3x128xf32> to vector<3x128xf32>
    %7 = vector.extract_strided_slice %6 {offsets = [0, 0], sizes = [2, 128], strides = [1, 1]} : vector<3x128xf32> to vector<2x128xf32>
    %8 = vector.extract_strided_slice %6 {offsets = [2, 0], sizes = [1, 128], strides = [1, 1]} : vector<3x128xf32> to vector<1x128xf32>
    %c0_6 = arith.constant 0 : index
    %c0_7 = arith.constant 0 : index
    %9 = vector.load %arg4[%c0_6, %c0_7] : memref<28x3xf32, #tpu.memory_space<vmem>>, vector<28x3xf32>
    %10 = vector.extract_strided_slice %9 {offsets = [0, 0], sizes = [28, 2], strides = [1, 1]} : vector<28x3xf32> to vector<28x2xf32>
    %cst = arith.constant dense<0.000000e+00> : vector<28x128xf32>
    %11 = tpu.matmul %10, %7, %cst {dimension_numbers = #tpu.dot_dimension_numbers<[1], [0], [0], [1], [0, 0, 1, 1], [], []>} : vector<28x2xf32>, vector<2x128xf32>, vector<28x128xf32> -> vector<28x128xf32>
    %12 = vector.extract_strided_slice %9 {offsets = [0, 2], sizes = [28, 1], strides = [1, 1]} : vector<28x3xf32> to vector<28x1xf32>
    %13 = vector.broadcast %12 : vector<28x1xf32> to vector<28x128xf32>
    %14 = arith.addf %11, %13 : vector<28x128xf32>
    %15 = math.sin %14 : vector<28x128xf32>
    %16 = arith.truncf %15 : vector<28x128xf32> to vector<28x128xbf16>
    %c0_8 = arith.constant 0 : index
    %c0_9 = arith.constant 0 : index
    %17 = vector.load %arg12[%c0_8, %c0_9] : memref<136x1xf32, #tpu.memory_space<vmem>>, vector<136x1xf32>
    %18 = vector.extract_strided_slice %17 {offsets = [0, 0], sizes = [64, 1], strides = [1, 1]} : vector<136x1xf32> to vector<64x1xf32>
    %19 = vector.extract_strided_slice %17 {offsets = [64, 0], sizes = [64, 1], strides = [1, 1]} : vector<136x1xf32> to vector<64x1xf32>
    %20 = vector.extract_strided_slice %17 {offsets = [128, 0], sizes = [8, 1], strides = [1, 1]} : vector<136x1xf32> to vector<8x1xf32>
    %c0_10 = arith.constant 0 : index
    %c0_11 = arith.constant 0 : index
    %21 = vector.load %arg5[%c0_10, %c0_11] : memref<64x72xbf16, #tpu.memory_space<vmem>>, vector<64x72xbf16>
    %cst_12 = arith.constant dense<0.000000e+00> : vector<64x128xf32>
    %22 = tpu.matmul %21, %4, %cst_12 {dimension_numbers = #tpu.dot_dimension_numbers<[1], [0], [0], [1], [0, 0, 1, 1], [], []>} : vector<64x72xbf16>, vector<72x128xbf16>, vector<64x128xf32> -> vector<64x128xf32>
    %c0_13 = arith.constant 0 : index
    %c0_14 = arith.constant 0 : index
    %23 = vector.load %arg6[%c0_13, %c0_14] : memref<64x2xf32, #tpu.memory_space<vmem>>, vector<64x2xf32>
    %cst_15 = arith.constant dense<0.000000e+00> : vector<64x128xf32>
    %24 = tpu.matmul %23, %7, %cst_15 {dimension_numbers = #tpu.dot_dimension_numbers<[1], [0], [0], [1], [0, 0, 1, 1], [], []>} : vector<64x2xf32>, vector<2x128xf32>, vector<64x128xf32> -> vector<64x128xf32>
    %25 = arith.addf %22, %24 : vector<64x128xf32>
    %c0_16 = arith.constant 0 : index
    %c0_17 = arith.constant 0 : index
    %26 = vector.load %arg7[%c0_16, %c0_17] : memref<64x28xbf16, #tpu.memory_space<vmem>>, vector<64x28xbf16>
    %cst_18 = arith.constant dense<0.000000e+00> : vector<64x128xf32>
    %27 = tpu.matmul %26, %16, %cst_18 {dimension_numbers = #tpu.dot_dimension_numbers<[1], [0], [0], [1], [0, 0, 1, 1], [], []>} : vector<64x28xbf16>, vector<28x128xbf16>, vector<64x128xf32> -> vector<64x128xf32>
    %28 = arith.addf %25, %27 : vector<64x128xf32>
    %29 = vector.broadcast %18 : vector<64x1xf32> to vector<64x128xf32>
    %30 = arith.addf %28, %29 : vector<64x128xf32>
    %cst_19 = arith.constant 0.000000e+00 : f32
    %31 = vector.broadcast %cst_19 : f32 to vector<64x128xf32>
    %32 = arith.maximumf %30, %31 : vector<64x128xf32>
    %c0_20 = arith.constant 0 : index
    %c0_21 = arith.constant 0 : index
    %33 = vector.load %arg8[%c0_20, %c0_21] : memref<64x64xbf16, #tpu.memory_space<vmem>>, vector<64x64xbf16>
    %34 = arith.truncf %32 : vector<64x128xf32> to vector<64x128xbf16>
    %cst_22 = arith.constant dense<0.000000e+00> : vector<64x128xf32>
    %35 = tpu.matmul %33, %34, %cst_22 {dimension_numbers = #tpu.dot_dimension_numbers<[1], [0], [0], [1], [0, 0, 1, 1], [], []>} : vector<64x64xbf16>, vector<64x128xbf16>, vector<64x128xf32> -> vector<64x128xf32>
    %c0_23 = arith.constant 0 : index
    %c0_24 = arith.constant 0 : index
    %36 = vector.load %arg9[%c0_23, %c0_24] : memref<64x2xf32, #tpu.memory_space<vmem>>, vector<64x2xf32>
    %cst_25 = arith.constant dense<0.000000e+00> : vector<64x128xf32>
    %37 = tpu.matmul %36, %7, %cst_25 {dimension_numbers = #tpu.dot_dimension_numbers<[1], [0], [0], [1], [0, 0, 1, 1], [], []>} : vector<64x2xf32>, vector<2x128xf32>, vector<64x128xf32> -> vector<64x128xf32>
    %38 = arith.addf %35, %37 : vector<64x128xf32>
    %c0_26 = arith.constant 0 : index
    %c0_27 = arith.constant 0 : index
    %39 = vector.load %arg10[%c0_26, %c0_27] : memref<64x28xbf16, #tpu.memory_space<vmem>>, vector<64x28xbf16>
    %cst_28 = arith.constant dense<0.000000e+00> : vector<64x128xf32>
    %40 = tpu.matmul %39, %16, %cst_28 {dimension_numbers = #tpu.dot_dimension_numbers<[1], [0], [0], [1], [0, 0, 1, 1], [], []>} : vector<64x28xbf16>, vector<28x128xbf16>, vector<64x128xf32> -> vector<64x128xf32>
    %41 = arith.addf %38, %40 : vector<64x128xf32>
    %42 = vector.broadcast %19 : vector<64x1xf32> to vector<64x128xf32>
    %43 = arith.addf %41, %42 : vector<64x128xf32>
    %cst_29 = arith.constant 0.000000e+00 : f32
    %44 = vector.broadcast %cst_29 : f32 to vector<64x128xf32>
    %45 = arith.maximumf %43, %44 : vector<64x128xf32>
    %c0_30 = arith.constant 0 : index
    %c0_31 = arith.constant 0 : index
    %46 = vector.load %arg11[%c0_30, %c0_31] : memref<8x64xf32, #tpu.memory_space<vmem>>, vector<8x64xf32>
    %cst_32 = arith.constant dense<0.000000e+00> : vector<8x128xf32>
    %47 = tpu.matmul %46, %45, %cst_32 {dimension_numbers = #tpu.dot_dimension_numbers<[1], [0], [0], [1], [0, 0, 1, 1], [], []>} : vector<8x64xf32>, vector<64x128xf32>, vector<8x128xf32> -> vector<8x128xf32>
    %48 = vector.broadcast %20 : vector<8x1xf32> to vector<8x128xf32>
    %49 = arith.addf %47, %48 : vector<8x128xf32>
    %c0_33 = arith.constant 0 : index
    %c0_34 = arith.constant 0 : index
    %50 = vector.load %arg14[%c0_33, %c0_34] : memref<8x128xf32, #tpu.memory_space<vmem>>, vector<8x128xf32>
    %51 = vector.broadcast %8 : vector<1x128xf32> to vector<8x128xf32>
    %52 = arith.mulf %49, %51 : vector<8x128xf32>
    %53 = arith.addf %50, %52 : vector<8x128xf32>
    %c0_35 = arith.constant 0 : index
    %c0_36 = arith.constant 0 : index
    %54 = vector.load %arg14[%c0_35, %c0_36] : memref<8x128xf32, #tpu.memory_space<vmem>>, vector<8x128xf32>
    tpu.vector_store %arg14[%c0_35, %c0_36], %53 {strides = array<i32>} : memref<8x128xf32, #tpu.memory_space<vmem>>, vector<8x128xf32>,
    %c3_i32 = arith.constant 3 : i32
    %55 = arith.cmpi eq, %arg1, %c3_i32 : i32
    %56 = arith.extui %55 : i1 to i32
    %c0_i32_37 = arith.constant 0 : i32
    %57 = arith.cmpi ne, %56, %c0_i32_37 : i32
    scf.if %57 {
      %c0_38 = arith.constant 0 : index
      %c0_39 = arith.constant 0 : index
      %58 = vector.load %arg14[%c0_38, %c0_39] : memref<8x128xf32, #tpu.memory_space<vmem>>, vector<8x128xf32>
      %c0_40 = arith.constant 0 : index
      %c0_41 = arith.constant 0 : index
      %59 = vector.load %arg13[%c0_40, %c0_41] : memref<8x128xf32, #tpu.memory_space<vmem>>, vector<8x128xf32>
      tpu.vector_store %arg13[%c0_40, %c0_41], %58 {strides = array<i32>} : memref<8x128xf32, #tpu.memory_space<vmem>>, vector<8x128xf32>,
    } else {
    }
    return
  }
  func.func @transform_0(%arg0: i32, %arg1: i32) -> (i32, i32, i32) {
    %c0_i32 = arith.constant 0 : i32
    %c0_i32_0 = arith.constant 0 : i32
    return %arg1, %c0_i32, %arg0 : i32, i32, i32
  }
  func.func @transform_1(%arg0: i32, %arg1: i32) -> (i32, i32, i32) {
    %c0_i32 = arith.constant 0 : i32
    %c0_i32_0 = arith.constant 0 : i32
    return %arg1, %c0_i32, %arg0 : i32, i32, i32
  }
  func.func @transform_2(%arg0: i32, %arg1: i32) -> (i32, i32) {
    %c0_i32 = arith.constant 0 : i32
    %c0_i32_0 = arith.constant 0 : i32
    %c0_i32_1 = arith.constant 0 : i32
    return %c0_i32, %c0_i32_0 : i32, i32
  }
  func.func @transform_3(%arg0: i32, %arg1: i32) -> (i32, i32) {
    %c0_i32 = arith.constant 0 : i32
    %c0_i32_0 = arith.constant 0 : i32
    %c0_i32_1 = arith.constant 0 : i32
    return %c0_i32, %c0_i32_0 : i32, i32
  }
  func.func @transform_4(%arg0: i32, %arg1: i32) -> (i32, i32) {
    %c0_i32 = arith.constant 0 : i32
    %c0_i32_0 = arith.constant 0 : i32
    %c0_i32_1 = arith.constant 0 : i32
    return %c0_i32, %c0_i32_0 : i32, i32
  }
  func.func @transform_5(%arg0: i32, %arg1: i32) -> (i32, i32) {
    %c0_i32 = arith.constant 0 : i32
    %c0_i32_0 = arith.constant 0 : i32
    %c0_i32_1 = arith.constant 0 : i32
    return %c0_i32, %c0_i32_0 : i32, i32
  }
  func.func @transform_6(%arg0: i32, %arg1: i32) -> (i32, i32) {
    %c0_i32 = arith.constant 0 : i32
    %c0_i32_0 = arith.constant 0 : i32
    %c0_i32_1 = arith.constant 0 : i32
    return %c0_i32, %c0_i32_0 : i32, i32
  }
  func.func @transform_7(%arg0: i32, %arg1: i32) -> (i32, i32) {
    %c0_i32 = arith.constant 0 : i32
    %c0_i32_0 = arith.constant 0 : i32
    %c0_i32_1 = arith.constant 0 : i32
    return %c0_i32, %c0_i32_0 : i32, i32
  }
  func.func @transform_8(%arg0: i32, %arg1: i32) -> (i32, i32) {
    %c0_i32 = arith.constant 0 : i32
    %c0_i32_0 = arith.constant 0 : i32
    %c0_i32_1 = arith.constant 0 : i32
    return %c0_i32, %c0_i32_0 : i32, i32
  }
  func.func @transform_9(%arg0: i32, %arg1: i32) -> (i32, i32) {
    %c0_i32 = arith.constant 0 : i32
    %c0_i32_0 = arith.constant 0 : i32
    %c0_i32_1 = arith.constant 0 : i32
    return %c0_i32, %c0_i32_0 : i32, i32
  }
  func.func @transform_10(%arg0: i32, %arg1: i32) -> (i32, i32) {
    %c0_i32 = arith.constant 0 : i32
    %c0_i32_0 = arith.constant 0 : i32
    %c0_i32_1 = arith.constant 0 : i32
    return %c0_i32, %c0_i32_0 : i32, i32
  }
  func.func @transform_11(%arg0: i32, %arg1: i32) -> (i32, i32) {
    %c0_i32 = arith.constant 0 : i32
    %c0_i32_0 = arith.constant 0 : i32
    return %c0_i32, %arg0 : i32, i32
  }
}

</mosaic_0001>

<llo_original>
// kernel: squeeze.43
$region0: #{squeeze.43}
  %s0 = inlined_call_operand.vmem [shape: bf16[2,16,16,1], index: 0, kind: input, shape index: {}]
  %s1 = inlined_call_operand.vmem [shape: bf16[1,512], index: 1, kind: output, shape index: {}]
  $region1: #{squeeze.43} parent=0
    #allocation0 [shape = 'u8[16384]{0}', space=vmem, size = 0x4000, scoped, tag = 'scoped mem for output reshape']
    #allocation1 [shape = 'u8[16384]{0}', space=vmem, size = 0x4000, scoped, tag = 'scoped mem for input reshape']
    %s3 = smul.u32 4, 2
    %s4 = sshllo.u32 0, %s3
    %s5 = smul.addr 4, 3
    %s6 = scalar_lea.vmem %s0, %s5
    %s7 = sshrl.u32 %s4, 1
    %s8 = sor.u32 %s4, %s7
    %s9 = sand.u32 %s8, 85
    %s10 = sshrl.u32 %s9, 1
    %s11 = sor.u32 %s9, %s10
    %s12 = sand.u32 51, %s11
    %s13 = sshrl.u32 %s12, 2
    %s14 = sor.u32 %s12, %s13
    %s15 = sand.u32 15, %s14
    %v16 = vld [vmem:[%s6] sm:%s15]
    %v17 = vunpack.c.l.bf16 %v16
    %v18 = vunpack.c.h.bf16 %v16
    %s19 = scalar_lea.vmem [#allocation1], 24
    %20 = vst [vmem:[%s19] sm:%s4] %v17
    %s21 = smul.addr 4, 2
    %s22 = scalar_lea.vmem %s0, %s21
    %s23 = sshrl.u32 %s4, 1
    %s24 = sor.u32 %s4, %s23
    %s25 = sand.u32 %s24, 85
    %s26 = sshrl.u32 %s25, 1
    %s27 = sor.u32 %s25, %s26
    %s28 = sand.u32 51, %s27
    %s29 = sshrl.u32 %s28, 2
    %s30 = sor.u32 %s28, %s29
    %s31 = sand.u32 15, %s30
    %v32 = vld [vmem:[%s22] sm:%s31]
    %v33 = vunpack.c.l.bf16 %v32
    %v34 = vunpack.c.h.bf16 %v32
    %s35 = scalar_lea.vmem [#allocation1], 16
    %36 = vst [vmem:[%s35] sm:%s4] %v33
    %s37 = scalar_lea.vmem %s0, 4
    %s38 = sshrl.u32 %s4, 1
    %s39 = sor.u32 %s4, %s38
    %s40 = sand.u32 %s39, 85
    %s41 = sshrl.u32 %s40, 1
    %s42 = sor.u32 %s40, %s41
    %s43 = sand.u32 51, %s42
    %s44 = sshrl.u32 %s43, 2
    %s45 = sor.u32 %s43, %s44
    %s46 = sand.u32 15, %s45
    %v47 = vld [vmem:[%s37] sm:%s46]
    %v48 = vunpack.c.l.bf16 %v47
    %v49 = vunpack.c.h.bf16 %v47
    %s50 = scalar_lea.vmem [#allocation1], 8
    %51 = vst [vmem:[%s50] sm:%s4] %v48
    %s52 = sshrl.u32 %s4, 1
    %s53 = sor.u32 %s4, %s52
    %s54 = sand.u32 %s53, 85
    %s55 = sshrl.u32 %s54, 1
    %s56 = sor.u32 %s54, %s55
    %s57 = sand.u32 51, %s56
    %s58 = sshrl.u32 %s57, 2
    %s59 = sor.u32 %s57, %s58
    %s60 = sand.u32 15, %s59
    %v61 = vld [vmem:[%s0] sm:%s60]
    %v62 = vunpack.c.l.bf16 %v61
    %v63 = vunpack.c.h.bf16 %v61
    %64 = vst [vmem:[#allocation1] sm:%s4] %v62
    %v65 = vld [vmem:[#allocation1] ss:$8 sm:$0xf]
    %vm66 = vcmask 130048
    %67 = vst.msk [vmem:[#allocation0] ss:$8 sm:$0xf] %vm66, %v65
    %s68 = scalar_lea.vmem [#allocation1], 7
    %v69 = vld [vmem:[%s68] ss:$8 sm:$0xf]
    %70 = vrot.lane.b32.xlu0 %v69, 112
    %v71 = vpop.permute.xlu0 %70
    %vm72 = vcmask 1048448
    %73 = vst.msk [vmem:[#allocation0] ss:$8 sm:$0xf] %vm72, %v71
    %s74 = scalar_lea.vmem [#allocation1], 6
    %v75 = vld [vmem:[%s74] ss:$8 sm:$0xf]
    %76 = vrot.lane.b32.xlu0 %v75, 96
    %v77 = vpop.permute.xlu0 %76
    %vm78 = vcmask 917248
    %79 = vst.msk [vmem:[#allocation0] ss:$8 sm:$0xf] %vm78, %v77
    %s80 = scalar_lea.vmem [#allocation1], 5
    %v81 = vld [vmem:[%s80] ss:$8 sm:$0xf]
    %82 = vrot.lane.b32.xlu0 %v81, 80
    %v83 = vpop.permute.xlu0 %82
    %vm84 = vcmask 786048
    %85 = vst.msk [vmem:[#allocation0] ss:$8 sm:$0xf] %vm84, %v83
    %s86 = scalar_lea.vmem [#allocation1], 4
    %v87 = vld [vmem:[%s86] ss:$8 sm:$0xf]
    %88 = vrot.lane.b32.xlu0 %v87, 64
    %v89 = vpop.permute.xlu0 %88
    %vm90 = vcmask 654848
    %91 = vst.msk [vmem:[#allocation0] ss:$8 sm:$0xf] %vm90, %v89
    %s92 = scalar_lea.vmem [#allocation1], 3
    %v93 = vld [vmem:[%s92] ss:$8 sm:$0xf]
    %94 = vrot.lane.b32.xlu0 %v93, 48
    %v95 = vpop.permute.xlu0 %94
    %vm96 = vcmask 523648
    %97 = vst.msk [vmem:[#allocation0] ss:$8 sm:$0xf] %vm96, %v95
    %s98 = scalar_lea.vmem [#allocation1], 2
    %v99 = vld [vmem:[%s98] ss:$8 sm:$0xf]
    %100 = vrot.lane.b32.xlu0 %v99, 32
    %v101 = vpop.permute.xlu0 %100
    %vm102 = vcmask 392448
    %103 = vst.msk [vmem:[#allocation0] ss:$8 sm:$0xf] %vm102, %v101
    %s104 = scalar_lea.vmem [#allocation1], 1
    %v105 = vld [vmem:[%s104] ss:$8 sm:$0xf]
    %106 = vrot.lane.b32.xlu0 %v105, 16
    %v107 = vpop.permute.xlu0 %106
    %vm108 = vcmask 261248
    %109 = vst.msk [vmem:[#allocation0] ss:$8 sm:$0xf] %vm108, %v107
    %s111 = smul.u32 1, 2
    %s112 = sshllo.u32 0, %s111
    %s113 = sshrl.u32 %s111, 1
    %v114 = vld [vmem:[#allocation0] sm:%s112]
    %v115 = vpack.c.bf16 0.0, %v114
    %s116 = sshllo.u32 0, %s113
    %117 = vst [vmem:[%s1] sm:%s116] %v115
    %s118 = scalar_lea.vmem [#allocation0], 8
    %v119 = vld [vmem:[%s118] sm:%s112]
    %v120 = vpack.c.bf16 0.0, %v119
    %s121 = sshllo.u32 0, %s113
    %s122 = scalar_lea.vmem %s1, 1
    %123 = vst [vmem:[%s122] sm:%s121] %v120
    %s124 = scalar_lea.vmem [#allocation0], 16
    %v125 = vld [vmem:[%s124] sm:%s112]
    %v126 = vpack.c.bf16 0.0, %v125
    %s127 = sshllo.u32 0, %s113
    %s128 = smul.addr 1, 2
    %s129 = scalar_lea.vmem %s1, %s128
    %130 = vst [vmem:[%s129] sm:%s127] %v126
    %s131 = scalar_lea.vmem [#allocation0], 24
    %v132 = vld [vmem:[%s131] sm:%s112]
    %v133 = vpack.c.bf16 0.0, %v132
    %s134 = sshllo.u32 0, %s113
    %s135 = smul.addr 1, 3
    %s136 = scalar_lea.vmem %s1, %s135
    %137 = vst [vmem:[%s136] sm:%s134] %v133

// kernel: ultrasr_forward.2
$region0: #{ultrasr_forward.2}
  #allocation0 [shape = 'u32[]', space=smem, size = 0x4, offset = 0x4, fixed_abs, tag = 'smem constant byte address 0x4 - core index']
  #allocation1 [shape = 'u32[144,128]{1,0:T(1,128)}', space=vmem, size = 0x12000, scoped, tag = 'internal scratch']
  %s0 = inlined_call_operand.vmem [shape: bf16[32,512], index: 0, kind: input, shape index: {}]
  %s1 = inlined_call_operand.vmem [shape: bf16[8,32], index: 1, kind: input, shape index: {}]
  %s2 = inlined_call_operand.vmem [shape: f32[8,1], index: 2, kind: input, shape index: {}]
  %s3 = inlined_call_operand.vmem [shape: bf16[8,512], index: 3, kind: output, shape index: {}]
  %s4 = sld [smem:[#allocation0]]
  $region83: #{ultrasr_forward.2} parent=0
    _
  %s6 = ssub.s32 1, %s4
  %s7 = scalar_select 0, %s6, %s4
  $region1: #{ultrasr_forward.2} parent=0
    #allocation2 [shape = 'u8[32768]{0}', space=vmem, size = 0x8000, scoped, tag = 'input window, operand 0']
    loop: start=0, step=1, limit=4
    $region2: #{ultrasr_forward.2} parent=1 // loop_pre_header
      _
    $region3: #{ultrasr_forward.2} parent=1 // loop_header
      %s9 = sphi 0, %s13
      %p10 = scmp.ge.s32.totalorder %s9, 4
      %s19 = sphi 0, %s21
      %s22 = sphi 0, %s19
      %s23 = sphi 0, %s22
      %s39 = sphi 0, %s23
      %s43 = sphi 0, %s43
      %s45 = sphi 0, %s43
      %s46 = sphi 0, %s45
      %s60 = sphi 0, %s46
      %s64 = sphi 0, %s64
      %s66 = sphi 0, %s64
      %s67 = sphi 0, %s66
      %s81 = sphi 0, %s67
      %s87 = sphi 0, %s89
      %s90 = sphi 0, %s87
      %s91 = sphi 0, %s90
      %s107 = sphi 0, %s91
    $region4: #{ultrasr_forward.2} parent=1 // loop_header_branch
      %12 = sbr.rel (%p10) target = $region8
    $region5: #{ultrasr_forward.2} parent=1 // loop_body
      %s14 = ssub.s32 %s9, 1
      %s15 = ssub.s32 %s9, 2
      %s16 = sadd.s32 %s9, 1
      %s17 = ssub.s32 %s9, %s16
      %p18 = scmp.eq.s32.totalorder %s17, 0
      %s20 = sadd.s32 %s19, 1
      %s21 = scalar_select %p18, %s19, %s20
      %p24 = pneg %p18
      %p25 = scmp.eq.s32.totalorder %s9, 1
      %p26 = por %p24, %p25
      %p27 = scmp.ne.s32.totalorder %s19, %s22
      %p28 = scmp.eq.s32.totalorder %s9, 0
      %p29 = por %p27, %p28
      %p30 = scmp.ne.s32.totalorder %s19, %s22
      %p31 = scmp.eq.s32.totalorder %s14, 1
      %p32 = por %p30, %p31
      %p33 = scmp.ne.s32.totalorder %s22, %s23
      %p34 = scmp.eq.s32.totalorder %s14, 0
      %p35 = por %p33, %p34
      %p36 = scmp.ne.s32.totalorder %s22, %s23
      %p37 = scmp.eq.s32.totalorder %s15, 1
      %p38 = por %p36, %p37
      %p40 = scmp.ne.s32.totalorder %s23, %s39
      %p41 = scmp.eq.s32.totalorder %s15, 0
      %p42 = por %p40, %p41
      %s44 = sadd.s32 %s43, 1
      %p47 = scmp.eq.s32.totalorder %s9, 1
      %p48 = scmp.ne.s32.totalorder %s43, %s45
      %p49 = scmp.eq.s32.totalorder %s9, 0
      %p50 = por %p48, %p49
      %p51 = scmp.ne.s32.totalorder %s43, %s45
      %p52 = scmp.eq.s32.totalorder %s14, 1
      %p53 = por %p51, %p52
      %p54 = scmp.ne.s32.totalorder %s45, %s46
      %p55 = scmp.eq.s32.totalorder %s14, 0
      %p56 = por %p54, %p55
      %p57 = scmp.ne.s32.totalorder %s45, %s46
      %p58 = scmp.eq.s32.totalorder %s15, 1
      %p59 = por %p57, %p58
      %p61 = scmp.ne.s32.totalorder %s46, %s60
      %p62 = scmp.eq.s32.totalorder %s15, 0
      %p63 = por %p61, %p62
      %s65 = sadd.s32 %s64, 1
      %p68 = scmp.eq.s32.totalorder %s9, 1
      %p69 = scmp.ne.s32.totalorder %s64, %s66
      %p70 = scmp.eq.s32.totalorder %s9, 0
      %p71 = por %p69, %p70
      %p72 = scmp.ne.s32.totalorder %s64, %s66
      %p73 = scmp.eq.s32.totalorder %s14, 1
      %p74 = por %p72, %p73
      %p75 = scmp.ne.s32.totalorder %s66, %s67
      %p76 = scmp.eq.s32.totalorder %s14, 0
      %p77 = por %p75, %p76
      %p78 = scmp.ne.s32.totalorder %s66, %s67
      %p79 = scmp.eq.s32.totalorder %s15, 1
      %p80 = por %p78, %p79
      %p82 = scmp.ne.s32.totalorder %s67, %s81
      %p83 = scmp.eq.s32.totalorder %s15, 0
      %p84 = por %p82, %p83
      %s85 = ssub.s32 %s9, %s16
      %p86 = scmp.eq.s32.totalorder %s85, 0
      %s88 = sadd.s32 %s87, 1
      %s89 = scalar_select %p86, %s87, %s88
      %p92 = pneg %p86
      %p93 = scmp.eq.s32.totalorder %s9, 1
      %p94 = por %p92, %p93
      %p95 = scmp.ne.s32.totalorder %s87, %s90
      %p96 = scmp.eq.s32.totalorder %s9, 0
      %p97 = por %p95, %p96
      %p98 = scmp.ne.s32.totalorder %s87, %s90
      %p99 = scmp.eq.s32.totalorder %s14, 1
      %p100 = por %p98, %p99
      %p101 = scmp.ne.s32.totalorder %s90, %s91
      %p102 = scmp.eq.s32.totalorder %s14, 0
      %p103 = por %p101, %p102
      %p104 = scmp.ne.s32.totalorder %s90, %s91
      %p105 = scmp.eq.s32.totalorder %s15, 1
      %p106 = por %p104, %p105
      %p108 = scmp.ne.s32.totalorder %s91, %s107
      %p109 = scmp.eq.s32.totalorder %s15, 0
      %p110 = por %p108, %p109
      %p111 = scmp.le.s32.totalorder 1, %s9
      %p112 = scmp.lt.s32.totalorder %s9, 3
      %p113 = pnand %p111, %p112
      %p114 = pneg %p113
      // Predicated region
      $region9: #{ultrasr_forward.2} parent=5 // pred_check
        _
      $region10: #{ultrasr_forward.2} parent=5 // pred_check_branch
        %116 = sbr.rel (%p113) target = $region12
      $region11: #{ultrasr_forward.2} parent=5 // pred_region
        %s117 = ssub.s32 %s9, 1
        // Predicated region
        $region13: #{ultrasr_forward.2} parent=11 // pred_check
          %p118 = pneg %p56
        $region14: #{ultrasr_forward.2} parent=11 // pred_check_branch
          %120 = sbr.rel (%p118) target = $region16
        $region15: #{ultrasr_forward.2} parent=11 // pred_region
          _
        $region16: #{ultrasr_forward.2} parent=11 // pred_fallthru
          _
        // Predicated region
        $region17: #{ultrasr_forward.2} parent=11 // pred_check
          %p121 = pneg %p77
        $region18: #{ultrasr_forward.2} parent=11 // pred_check_branch
          %123 = sbr.rel (%p121) target = $region20
        $region19: #{ultrasr_forward.2} parent=11 // pred_region
          _
        $region20: #{ultrasr_forward.2} parent=11 // pred_fallthru
          _
      $region12: #{ultrasr_forward.2} parent=5 // pred_fallthru
        _
      %p124 = scmp.lt.s32.totalorder %s9, 2
      // Predicated region
      $region21: #{ultrasr_forward.2} parent=5 // pred_check
        %p125 = pneg %p124
      $region22: #{ultrasr_forward.2} parent=5 // pred_check_branch
        %127 = sbr.rel (%p125) target = $region24
      $region23: #{ultrasr_forward.2} parent=5 // pred_region
        // Predicated region
        $region25: #{ultrasr_forward.2} parent=23 // pred_check
          %p128 = pneg %p29
        $region26: #{ultrasr_forward.2} parent=23 // pred_check_branch
          %130 = sbr.rel (%p128) target = $region28
        $region27: #{ultrasr_forward.2} parent=23 // pred_region
          %s131 = sand.u32 %s19, 1
          %s132 = sand.u32 %s19, 1
          %s133 = smul.addr %s132, 32
          %s134 = scalar_lea.vmem [#allocation2], %s133
          %s135 = smul.u32 2, %s9
          %s136 = smul.addr %s135, 4
          %s137 = scalar_lea.vmem %s0, %s136
          // Predicated region
          $region29: #{ultrasr_forward.2} parent=27 // pred_check
            _
          $region30: #{ultrasr_forward.2} parent=27 // pred_check_branch
            %139 = sbr.rel (0) target = $region32
          $region31: #{ultrasr_forward.2} parent=27 // pred_region
            // Predicated region
            $region33: #{ultrasr_forward.2} parent=31 // pred_check
              _
            $region34: #{ultrasr_forward.2} parent=31 // pred_check_branch
              %141 = sbr.rel (0) target = $region36
            $region35: #{ultrasr_forward.2} parent=31 // pred_region
              // Predicated region
              $region48: #{ultrasr_forward.2} parent=35 // pred_check
                _
              $region49: #{ultrasr_forward.2} parent=35 // pred_check_branch
                %162 = sbr.rel (0) target = $region51
              $region50: #{ultrasr_forward.2} parent=35 // pred_region
                loop: start=0, step=1, limit=1
                $region52: #{ultrasr_forward.2} parent=50 // loop_pre_header
                  _
                $region53: #{ultrasr_forward.2} parent=50 // loop_header
                  %s164 = sphi 0, %s168
                  %p165 = scmp.ge.s32.totalorder %s164, 1
                  %s169 = sphi %s137, %s137
                  %s170 = sphi %s134, %s134
                $region54: #{ultrasr_forward.2} parent=50 // loop_header_branch
                  %167 = sbr.rel (%p165) target = $region58
                $region55: #{ultrasr_forward.2} parent=50 // loop_body
                  %v171 = vld [vmem:[%s169] sm:$0xff]
                  %172 = vst [vmem:[%s170] sm:$0xff] %v171
                  %v173 = vld [vmem:[%s169 + $0x10] sm:$0xff]
                  %174 = vst [vmem:[%s170 + $0x8] sm:$0xff] %v173
                  %v175 = vld [vmem:[%s169 + $0x20] sm:$0xff]
                  %176 = vst [vmem:[%s170 + $0x10] sm:$0xff] %v175
                  %v177 = vld [vmem:[%s169 + $0x30] sm:$0xff]
                  %178 = vst [vmem:[%s170 + $0x18] sm:$0xff] %v177
                $region56: #{ultrasr_forward.2} parent=50 // loop_footer
                  %s168 = sadd.s32 1, %s164
                $region57: #{ultrasr_forward.2} parent=50 // loop_footer_branch
                  %163 = sbr.rel target = $region53
                $region58: #{ultrasr_forward.2} parent=50 // loop_exit
                  _
              $region51: #{ultrasr_forward.2} parent=35 // pred_fallthru
                _
              // Predicated region
              $region59: #{ultrasr_forward.2} parent=35 // pred_check
                _
              $region60: #{ultrasr_forward.2} parent=35 // pred_check_branch
                %180 = sbr.rel target = $region62
              $region61: #{ultrasr_forward.2} parent=35 // pred_region
                _
              $region62: #{ultrasr_forward.2} parent=35 // pred_fallthru
                _
            $region36: #{ultrasr_forward.2} parent=31 // pred_fallthru
              _
            // Predicated region
            $region37: #{ultrasr_forward.2} parent=31 // pred_check
              _
            $region38: #{ultrasr_forward.2} parent=31 // pred_check_branch
              %143 = sbr.rel target = $region40
            $region39: #{ultrasr_forward.2} parent=31 // pred_region
              loop: start=0, step=1, limit=1
              $region41: #{ultrasr_forward.2} parent=39 // loop_pre_header
                _
              $region42: #{ultrasr_forward.2} parent=39 // loop_header
                %s146 = sphi 0, %s150
                %p147 = scmp.ge.s32.totalorder %s146, 1
                %s151 = sphi %s137, %s137
                %s152 = sphi %s134, %s134
              $region43: #{ultrasr_forward.2} parent=39 // loop_header_branch
                %149 = sbr.rel (%p147) target = $region47
              $region44: #{ultrasr_forward.2} parent=39 // loop_body
                %v153 = vld [vmem:[%s151] sm:$0xff]
                %154 = vst [vmem:[%s152] sm:$0xff] %v153
                %v155 = vld [vmem:[%s151 + $0x10] sm:$0xff]
                %156 = vst [vmem:[%s152 + $0x8] sm:$0xff] %v155
                %v157 = vld [vmem:[%s151 + $0x20] sm:$0xff]
                %158 = vst [vmem:[%s152 + $0x10] sm:$0xff] %v157
                %v159 = vld [vmem:[%s151 + $0x30] sm:$0xff]
                %160 = vst [vmem:[%s152 + $0x18] sm:$0xff] %v159
              $region45: #{ultrasr_forward.2} parent=39 // loop_footer
                %s150 = sadd.s32 1, %s146
              $region46: #{ultrasr_forward.2} parent=39 // loop_footer_branch
                %145 = sbr.rel target = $region42
              $region47: #{ultrasr_forward.2} parent=39 // loop_exit
                _
            $region40: #{ultrasr_forward.2} parent=31 // pred_fallthru
              _
          $region32: #{ultrasr_forward.2} parent=27 // pred_fallthru
            _
          %181 = vnop
        $region28: #{ultrasr_forward.2} parent=23 // pred_fallthru
          _
      $region24: #{ultrasr_forward.2} parent=5 // pred_fallthru
        _
      %p182 = scmp.le.s32.totalorder 1, %s9
      %p183 = scmp.lt.s32.totalorder %s9, 3
      %p184 = pnand %p182, %p183
      %p185 = pneg %p184
      // Predicated region
      $region63: #{ultrasr_forward.2} parent=5 // pred_check
        _
      $region64: #{ultrasr_forward.2} parent=5 // pred_check_branch
        %187 = sbr.rel (%p184) target = $region66
      $region65: #{ultrasr_forward.2} parent=5 // pred_region
        %s188 = ssub.s32 %s9, 1
        %s189 = sand.u32 %s22, 1
        %s190 = sand.u32 %s22, 1
        %s191 = smul.addr %s190, 32
        %s192 = scalar_lea.vmem [#allocation2], %s191
        // Predicated region
        $region67: #{ultrasr_forward.2} parent=65 // pred_check
          %p193 = pneg %p35
        $region68: #{ultrasr_forward.2} parent=65 // pred_check_branch
          %195 = sbr.rel (%p193) target = $region70
        $region69: #{ultrasr_forward.2} parent=65 // pred_region
          _
        $region70: #{ultrasr_forward.2} parent=65 // pred_fallthru
          _
        %s196 = sand.u32 %s22, 1
        %s197 = sand.u32 %s22, 1
        %s198 = smul.addr %s197, 32
        %s199 = scalar_lea.vmem [#allocation2], %s198
        %p200 = pneg %p35
        %p201 = pneg %p32
        %p202 = pneg %p56
        %p203 = pneg %p53
        %p204 = pneg %p77
        %p205 = pneg %p74
        %p206 = pneg %p103
        %p207 = pneg %p100
        %s208 = smul.u32 2, %s14
        %p209 = scmp.lt.s32.totalorder %s208, 3
        %s210 = scalar_select %p209, %s208, 3
        %s211 = smul.addr %s210, 4
        %s212 = scalar_lea.vmem %s3, %s211
        %s213 = smul.u32 2, %s14
        %s214 = smul.u32 2, %s14
        %p215 = scmp.lt.s32.totalorder %s214, 3
        %s216 = scalar_select %p215, %s214, 3
        %s217 = smul.addr %s216, 4
        %s218 = scalar_lea.vmem %s3, %s217
        %s219 = smul.u32 2, %s14
        %v221 = vld [vmem:[%s1] sm:$0xf]
        %v222 = vld [vmem:[%s192] sm:$0xff]
        %v223 = vld [vmem:[%s192 + $0x8] sm:$0xff]
        %v224 = vld [vmem:[%s192 + $0x10] sm:$0xff]
        %v225 = vld [vmem:[%s192 + $0x18] sm:$0xff]
        %v226 = vld [vmem:[%s2] sm:$0xff]
        %228 = vset.pattern.permute.xlu0 0
        %229 = vperm.xlu0 %228, %v226
        %v230 = vpop.permute.xlu0 %229
        %v236 = vunpack.c.l.b16 %v222
        %v237 = vunpack.c.h.b16 %v222
        %v238 = vunpack.c.l.b16 %v223
        %v239 = vunpack.c.h.b16 %v223
        %v240 = vunpack.c.l.b16 %v224
        %v241 = vunpack.c.h.b16 %v224
        %v242 = vunpack.c.l.b16 %v225
        %v243 = vunpack.c.h.b16 %v225
        %v244 = vpack.c.b16 %v238, %v236
        %v245 = vpack.c.b16 %v239, %v237
        %v246 = vpack.c.b16 %v242, %v240
        %v247 = vpack.c.b16 %v243, %v241
        %vm252 = vcmask 261120
        %v254 = vsel %vm252, %v221, 0
        %256 = vmatprep.subr.bf16.mxu0 %v245
        %257 = vmatpush1.bf16.msra.mxu0 %v244
        %258 = vmatprep.subr.bf16.mxu0 %v247
        %259 = vmatpush1.bf16.msra.mxu0 %v246
        %260 = vmatprep.subr.bf16.mxu0 0
        %261 = vmatpush1.bf16.msra.mxu0 0
        %262 = vmatprep.subr.bf16.mxu0 0
        %263 = vmatpush1.bf16.msra.mxu0 0
        %264 = vmatprep.subr.bf16.mxu0 0
        %265 = vmatpush1.bf16.msra.mxu0 0
        %266 = vmatprep.subr.bf16.mxu0 0
        %267 = vmatpush1.bf16.msra.mxu0 0
        %268 = vmatprep.subr.bf16.mxu0 0
        %269 = vmatpush1.bf16.msra.mxu0 0
        %270 = vmatprep.subr.bf16.mxu0 0
        %271 = vmatpush1.bf16.msra.mxu0 0
        %272 = vmatprep.subr.bf16.mxu0 0
        %273 = vmatpush1.bf16.msra.mxu0 0
        %274 = vmatprep.subr.bf16.mxu0 0
        %275 = vmatpush1.bf16.msra.mxu0 0
        %276 = vmatprep.subr.bf16.mxu0 0
        %277 = vmatpush1.bf16.msra.mxu0 0
        %278 = vmatprep.subr.bf16.mxu0 0
        %279 = vmatpush1.bf16.msra.mxu0 0
        %280 = vmatprep.subr.bf16.mxu0 0
        %281 = vmatpush1.bf16.msra.mxu0 0
        %282 = vmatprep.subr.bf16.mxu0 0
        %283 = vmatpush1.bf16.msra.mxu0 0
        %284 = vmatprep.subr.bf16.mxu0 0
        %285 = vmatpush1.bf16.msra.mxu0 0
        %286 = vmatprep.subr.bf16.mxu0 0
        %287 = vmatpush1.bf16.msra.mxu0 0
        %288 = vmatprep.mubr.bf16.mxu0 0
        %289 = vmatmul.mubr.bf16.gmra.mrb[0].mxu0 %v254
        %v290 = vpop.f32.mrb[0].mxu0
        %v291 = vadd.f32 %v230, %v290
        %v292 = vpop.f32.mrb[0].mxu0
        %v293 = vadd.f32 %v230, %v292
        %v294 = vpop.f32.mrb[0].mxu0
        %v295 = vpop.f32.mrb[0].mxu0
        %296 = vdwg.mxu0
        %v297 = vpack.c.bf16 %v291, %v291
        %v298 = vpack.c.bf16 %v293, %v293
        %v301 = vunpack.c.l.b16 %v297
        %v302 = vunpack.c.l.b16 %v298
        %v303 = vpack.c.b16 %v302, %v301
        %305 = vst [vmem:[%s218] sm:$0xff] %v303
        %s306 = smul.u32 2, %s14
        %p307 = scmp.lt.s32.totalorder %s306, 3
        %s308 = scalar_select %p307, %s306, 3
        %s309 = smul.addr %s308, 4
        %s310 = scalar_lea.vmem %s3, %s309
        // Predicated region
        $region71: #{ultrasr_forward.2} parent=65 // pred_check
          %p311 = pneg %p100
        $region72: #{ultrasr_forward.2} parent=65 // pred_check_branch
          %313 = sbr.rel (%p311) target = $region74
        $region73: #{ultrasr_forward.2} parent=65 // pred_region
          %s314 = smul.u32 2, %s14
        $region74: #{ultrasr_forward.2} parent=65 // pred_fallthru
          _
      $region66: #{ultrasr_forward.2} parent=5 // pred_fallthru
        _
      %p315 = scmp.le.s32.totalorder 2, %s9
      // Predicated region
      $region75: #{ultrasr_forward.2} parent=5 // pred_check
        %p316 = pneg %p315
      $region76: #{ultrasr_forward.2} parent=5 // pred_check_branch
        %318 = sbr.rel (%p316) target = $region78
      $region77: #{ultrasr_forward.2} parent=5 // pred_region
        %s319 = ssub.s32 %s9, 2
        // Predicated region
        $region79: #{ultrasr_forward.2} parent=77 // pred_check
          %p320 = pneg %p106
        $region80: #{ultrasr_forward.2} parent=77 // pred_check_branch
          %322 = sbr.rel (%p320) target = $region82
        $region81: #{ultrasr_forward.2} parent=77 // pred_region
          %s323 = smul.u32 2, %s15
          %p324 = scmp.lt.s32.totalorder %s323, 3
          %s325 = scalar_select %p324, %s323, 3
          %s326 = smul.addr %s325, 4
          %s327 = scalar_lea.vmem %s3, %s326
        $region82: #{ultrasr_forward.2} parent=77 // pred_fallthru
          _
      $region78: #{ultrasr_forward.2} parent=5 // pred_fallthru
        _
    $region6: #{ultrasr_forward.2} parent=1 // loop_footer
      %s13 = sadd.s32 1, %s9
    $region7: #{ultrasr_forward.2} parent=1 // loop_footer_branch
      %8 = sbr.rel target = $region3
    $region8: #{ultrasr_forward.2} parent=1 // loop_exit
      _

// kernel: ultrasr_forward.3
$region0: #{ultrasr_forward.3}
  #allocation0 [shape = 'u32[]', space=smem, size = 0x4, offset = 0x4, fixed_abs, tag = 'smem constant byte address 0x4 - core index']
  #allocation1 [shape = 'u32[144,128]{1,0:T(1,128)}', space=vmem, size = 0x12000, scoped, tag = 'internal scratch']
  #allocation2 [shape = 'f32[8,128]{1,0:T(8,128)}', space=vmem, size = 0x1000, scoped, tag = 'scratch operand']
  %s0 = inlined_call_operand.vmem [shape: bf16[4,72,128], index: 0, kind: input, shape index: {}]
  %s1 = inlined_call_operand.vmem [shape: f32[4,3,128], index: 1, kind: input, shape index: {}]
  %s2 = inlined_call_operand.vmem [shape: f32[28,3], index: 2, kind: input, shape index: {}]
  %s3 = inlined_call_operand.vmem [shape: bf16[64,72], index: 3, kind: input, shape index: {}]
  %s4 = inlined_call_operand.vmem [shape: f32[64,2], index: 4, kind: input, shape index: {}]
  %s5 = inlined_call_operand.vmem [shape: bf16[64,28], index: 5, kind: input, shape index: {}]
  %s6 = inlined_call_operand.vmem [shape: bf16[64,64], index: 6, kind: input, shape index: {}]
  %s7 = inlined_call_operand.vmem [shape: f32[64,2], index: 7, kind: input, shape index: {}]
  %s8 = inlined_call_operand.vmem [shape: bf16[64,28], index: 8, kind: input, shape index: {}]
  %s9 = inlined_call_operand.vmem [shape: f32[8,64], index: 9, kind: input, shape index: {}]
  %s10 = inlined_call_operand.vmem [shape: f32[136,1], index: 10, kind: input, shape index: {}]
  %s11 = inlined_call_operand.vmem [shape: f32[8,128], index: 11, kind: output, shape index: {}]
  %s12 = sld [smem:[#allocation0]]
  $region85: #{ultrasr_forward.3} parent=0
    _
  %s14 = ssub.s32 1, %s12
  %s15 = scalar_select 0, %s14, %s12
  loop: start=0, step=1, limit=6
  $region2: #{ultrasr_forward.3} parent=0 // loop_pre_header
    _
  $region3: #{ultrasr_forward.3} parent=0 // loop_header
    %s17 = sphi 0, %s21
    %p18 = scmp.ge.s32.totalorder %s17, 6
    %s24 = sphi 0, %s36
    %s25 = sphi 0, %s32
    %s26 = sphi 0, %s24
    %s27 = sphi 0, %s25
    %s28 = sphi 0, %s26
    %s29 = sphi 0, %s27
    %s41 = sphi 0, %s43
    %s44 = sphi 0, %s41
    %s45 = sphi 0, %s44
    %s61 = sphi 0, %s45
    %s69 = sphi 0, %s71
    %s72 = sphi 0, %s69
    %s73 = sphi 0, %s72
    %s89 = sphi 0, %s73
    %s93 = sphi 0, %s93
    %s95 = sphi 0, %s93
    %s96 = sphi 0, %s95
    %s110 = sphi 0, %s96
    %s114 = sphi 0, %s114
    %s116 = sphi 0, %s114
    %s117 = sphi 0, %s116
    %s131 = sphi 0, %s117
    %s135 = sphi 0, %s135
    %s137 = sphi 0, %s135
    %s138 = sphi 0, %s137
    %s152 = sphi 0, %s138
    %s156 = sphi 0, %s156
    %s158 = sphi 0, %s156
    %s159 = sphi 0, %s158
    %s173 = sphi 0, %s159
    %s177 = sphi 0, %s177
    %s179 = sphi 0, %s177
    %s180 = sphi 0, %s179
    %s194 = sphi 0, %s180
    %s198 = sphi 0, %s198
    %s200 = sphi 0, %s198
    %s201 = sphi 0, %s200
    %s215 = sphi 0, %s201
    %s219 = sphi 0, %s219
    %s221 = sphi 0, %s219
    %s222 = sphi 0, %s221
    %s236 = sphi 0, %s222
    %s240 = sphi 0, %s240
    %s242 = sphi 0, %s240
    %s243 = sphi 0, %s242
    %s257 = sphi 0, %s243
    %s261 = sphi 0, %s261
    %s263 = sphi 0, %s261
    %s264 = sphi 0, %s263
    %s278 = sphi 0, %s264
    %s284 = sphi 0, %s286
    %s287 = sphi 0, %s284
    %s288 = sphi 0, %s287
    %s304 = sphi 0, %s288
  $region4: #{ultrasr_forward.3} parent=0 // loop_header_branch
    %20 = sbr.rel (%p18) target = $region8
  $region5: #{ultrasr_forward.3} parent=0 // loop_body
    %s22 = ssub.s32 %s17, 1
    %s23 = ssub.s32 %s17, 2
    %s30 = sadd.s32 1, %s25
    %p31 = scmp.ge.s32.totalorder %s30, 4
    %s32 = scalar_select %p31, 0, %s30
    %s33 = sadd.s32 1, %s24
    %s34 = scalar_select %p31, %s33, %s24
    %p35 = scmp.ge.s32.totalorder %s34, 1
    %s36 = scalar_select %p35, 0, %s34
    %s37 = ssub.s32 %s25, %s32
    %s38 = ssub.s32 %s24, %s36
    %s39 = sor.u32 %s37, %s38
    %p40 = scmp.eq.s32.totalorder %s39, 0
    %s42 = sadd.s32 %s41, 1
    %s43 = scalar_select %p40, %s41, %s42
    %p46 = pneg %p40
    %p47 = scmp.eq.s32.totalorder %s17, 3
    %p48 = por %p46, %p47
    %p49 = scmp.ne.s32.totalorder %s41, %s44
    %p50 = scmp.eq.s32.totalorder %s17, 0
    %p51 = por %p49, %p50
    %p52 = scmp.ne.s32.totalorder %s41, %s44
    %p53 = scmp.eq.s32.totalorder %s22, 3
    %p54 = por %p52, %p53
    %p55 = scmp.ne.s32.totalorder %s44, %s45
    %p56 = scmp.eq.s32.totalorder %s22, 0
    %p57 = por %p55, %p56
    %p58 = scmp.ne.s32.totalorder %s44, %s45
    %p59 = scmp.eq.s32.totalorder %s23, 3
    %p60 = por %p58, %p59
    %p62 = scmp.ne.s32.totalorder %s45, %s61
    %p63 = scmp.eq.s32.totalorder %s23, 0
    %p64 = por %p62, %p63
    %s65 = ssub.s32 %s25, %s32
    %s66 = ssub.s32 %s24, %s36
    %s67 = sor.u32 %s65, %s66
    %p68 = scmp.eq.s32.totalorder %s67, 0
    %s70 = sadd.s32 %s69, 1
    %s71 = scalar_select %p68, %s69, %s70
    %p74 = pneg %p68
    %p75 = scmp.eq.s32.totalorder %s17, 3
    %p76 = por %p74, %p75
    %p77 = scmp.ne.s32.totalorder %s69, %s72
    %p78 = scmp.eq.s32.totalorder %s17, 0
    %p79 = por %p77, %p78
    %p80 = scmp.ne.s32.totalorder %s69, %s72
    %p81 = scmp.eq.s32.totalorder %s22, 3
    %p82 = por %p80, %p81
    %p83 = scmp.ne.s32.totalorder %s72, %s73
    %p84 = scmp.eq.s32.totalorder %s22, 0
    %p85 = por %p83, %p84
    %p86 = scmp.ne.s32.totalorder %s72, %s73
    %p87 = scmp.eq.s32.totalorder %s23, 3
    %p88 = por %p86, %p87
    %p90 = scmp.ne.s32.totalorder %s73, %s89
    %p91 = scmp.eq.s32.totalorder %s23, 0
    %p92 = por %p90, %p91
    %s94 = sadd.s32 %s93, 1
    %p97 = scmp.eq.s32.totalorder %s17, 3
    %p98 = scmp.ne.s32.totalorder %s93, %s95
    %p99 = scmp.eq.s32.totalorder %s17, 0
    %p100 = por %p98, %p99
    %p101 = scmp.ne.s32.totalorder %s93, %s95
    %p102 = scmp.eq.s32.totalorder %s22, 3
    %p103 = por %p101, %p102
    %p104 = scmp.ne.s32.totalorder %s95, %s96
    %p105 = scmp.eq.s32.totalorder %s22, 0
    %p106 = por %p104, %p105
    %p107 = scmp.ne.s32.totalorder %s95, %s96
    %p108 = scmp.eq.s32.totalorder %s23, 3
    %p109 = por %p107, %p108
    %p111 = scmp.ne.s32.totalorder %s96, %s110
    %p112 = scmp.eq.s32.totalorder %s23, 0
    %p113 = por %p111, %p112
    %s115 = sadd.s32 %s114, 1
    %p118 = scmp.eq.s32.totalorder %s17, 3
    %p119 = scmp.ne.s32.totalorder %s114, %s116
    %p120 = scmp.eq.s32.totalorder %s17, 0
    %p121 = por %p119, %p120
    %p122 = scmp.ne.s32.totalorder %s114, %s116
    %p123 = scmp.eq.s32.totalorder %s22, 3
    %p124 = por %p122, %p123
    %p125 = scmp.ne.s32.totalorder %s116, %s117
    %p126 = scmp.eq.s32.totalorder %s22, 0
    %p127 = por %p125, %p126
    %p128 = scmp.ne.s32.totalorder %s116, %s117
    %p129 = scmp.eq.s32.totalorder %s23, 3
    %p130 = por %p128, %p129
    %p132 = scmp.ne.s32.totalorder %s117, %s131
    %p133 = scmp.eq.s32.totalorder %s23, 0
    %p134 = por %p132, %p133
    %s136 = sadd.s32 %s135, 1
    %p139 = scmp.eq.s32.totalorder %s17, 3
    %p140 = scmp.ne.s32.totalorder %s135, %s137
    %p141 = scmp.eq.s32.totalorder %s17, 0
    %p142 = por %p140, %p141
    %p143 = scmp.ne.s32.totalorder %s135, %s137
    %p144 = scmp.eq.s32.totalorder %s22, 3
    %p145 = por %p143, %p144
    %p146 = scmp.ne.s32.totalorder %s137, %s138
    %p147 = scmp.eq.s32.totalorder %s22, 0
    %p148 = por %p146, %p147
    %p149 = scmp.ne.s32.totalorder %s137, %s138
    %p150 = scmp.eq.s32.totalorder %s23, 3
    %p151 = por %p149, %p150
    %p153 = scmp.ne.s32.totalorder %s138, %s152
    %p154 = scmp.eq.s32.totalorder %s23, 0
    %p155 = por %p153, %p154
    %s157 = sadd.s32 %s156, 1
    %p160 = scmp.eq.s32.totalorder %s17, 3
    %p161 = scmp.ne.s32.totalorder %s156, %s158
    %p162 = scmp.eq.s32.totalorder %s17, 0
    %p163 = por %p161, %p162
    %p164 = scmp.ne.s32.totalorder %s156, %s158
    %p165 = scmp.eq.s32.totalorder %s22, 3
    %p166 = por %p164, %p165
    %p167 = scmp.ne.s32.totalorder %s158, %s159
    %p168 = scmp.eq.s32.totalorder %s22, 0
    %p169 = por %p167, %p168
    %p170 = scmp.ne.s32.totalorder %s158, %s159
    %p171 = scmp.eq.s32.totalorder %s23, 3
    %p172 = por %p170, %p171
    %p174 = scmp.ne.s32.totalorder %s159, %s173
    %p175 = scmp.eq.s32.totalorder %s23, 0
    %p176 = por %p174, %p175
    %s178 = sadd.s32 %s177, 1
    %p181 = scmp.eq.s32.totalorder %s17, 3
    %p182 = scmp.ne.s32.totalorder %s177, %s179
    %p183 = scmp.eq.s32.totalorder %s17, 0
    %p184 = por %p182, %p183
    %p185 = scmp.ne.s32.totalorder %s177, %s179
    %p186 = scmp.eq.s32.totalorder %s22, 3
    %p187 = por %p185, %p186
    %p188 = scmp.ne.s32.totalorder %s179, %s180
    %p189 = scmp.eq.s32.totalorder %s22, 0
    %p190 = por %p188, %p189
    %p191 = scmp.ne.s32.totalorder %s179, %s180
    %p192 = scmp.eq.s32.totalorder %s23, 3
    %p193 = por %p191, %p192
    %p195 = scmp.ne.s32.totalorder %s180, %s194
    %p196 = scmp.eq.s32.totalorder %s23, 0
    %p197 = por %p195, %p196
    %s199 = sadd.s32 %s198, 1
    %p202 = scmp.eq.s32.totalorder %s17, 3
    %p203 = scmp.ne.s32.totalorder %s198, %s200
    %p204 = scmp.eq.s32.totalorder %s17, 0
    %p205 = por %p203, %p204
    %p206 = scmp.ne.s32.totalorder %s198, %s200
    %p207 = scmp.eq.s32.totalorder %s22, 3
    %p208 = por %p206, %p207
    %p209 = scmp.ne.s32.totalorder %s200, %s201
    %p210 = scmp.eq.s32.totalorder %s22, 0
    %p211 = por %p209, %p210
    %p212 = scmp.ne.s32.totalorder %s200, %s201
    %p213 = scmp.eq.s32.totalorder %s23, 3
    %p214 = por %p212, %p213
    %p216 = scmp.ne.s32.totalorder %s201, %s215
    %p217 = scmp.eq.s32.totalorder %s23, 0
    %p218 = por %p216, %p217
    %s220 = sadd.s32 %s219, 1
    %p223 = scmp.eq.s32.totalorder %s17, 3
    %p224 = scmp.ne.s32.totalorder %s219, %s221
    %p225 = scmp.eq.s32.totalorder %s17, 0
    %p226 = por %p224, %p225
    %p227 = scmp.ne.s32.totalorder %s219, %s221
    %p228 = scmp.eq.s32.totalorder %s22, 3
    %p229 = por %p227, %p228
    %p230 = scmp.ne.s32.totalorder %s221, %s222
    %p231 = scmp.eq.s32.totalorder %s22, 0
    %p232 = por %p230, %p231
    %p233 = scmp.ne.s32.totalorder %s221, %s222
    %p234 = scmp.eq.s32.totalorder %s23, 3
    %p235 = por %p233, %p234
    %p237 = scmp.ne.s32.totalorder %s222, %s236
    %p238 = scmp.eq.s32.totalorder %s23, 0
    %p239 = por %p237, %p238
    %s241 = sadd.s32 %s240, 1
    %p244 = scmp.eq.s32.totalorder %s17, 3
    %p245 = scmp.ne.s32.totalorder %s240, %s242
    %p246 = scmp.eq.s32.totalorder %s17, 0
    %p247 = por %p245, %p246
    %p248 = scmp.ne.s32.totalorder %s240, %s242
    %p249 = scmp.eq.s32.totalorder %s22, 3
    %p250 = por %p248, %p249
    %p251 = scmp.ne.s32.totalorder %s242, %s243
    %p252 = scmp.eq.s32.totalorder %s22, 0
    %p253 = por %p251, %p252
    %p254 = scmp.ne.s32.totalorder %s242, %s243
    %p255 = scmp.eq.s32.totalorder %s23, 3
    %p256 = por %p254, %p255
    %p258 = scmp.ne.s32.totalorder %s243, %s257
    %p259 = scmp.eq.s32.totalorder %s23, 0
    %p260 = por %p258, %p259
    %s262 = sadd.s32 %s261, 1
    %p265 = scmp.eq.s32.totalorder %s17, 3
    %p266 = scmp.ne.s32.totalorder %s261, %s263
    %p267 = scmp.eq.s32.totalorder %s17, 0
    %p268 = por %p266, %p267
    %p269 = scmp.ne.s32.totalorder %s261, %s263
    %p270 = scmp.eq.s32.totalorder %s22, 3
    %p271 = por %p269, %p270
    %p272 = scmp.ne.s32.totalorder %s263, %s264
    %p273 = scmp.eq.s32.totalorder %s22, 0
    %p274 = por %p272, %p273
    %p275 = scmp.ne.s32.totalorder %s263, %s264
    %p276 = scmp.eq.s32.totalorder %s23, 3
    %p277 = por %p275, %p276
    %p279 = scmp.ne.s32.totalorder %s264, %s278
    %p280 = scmp.eq.s32.totalorder %s23, 0
    %p281 = por %p279, %p280
    %s282 = ssub.s32 %s24, %s36
    %p283 = scmp.eq.s32.totalorder %s282, 0
    %s285 = sadd.s32 %s284, 1
    %s286 = scalar_select %p283, %s284, %s285
    %p289 = pneg %p283
    %p290 = scmp.eq.s32.totalorder %s17, 3
    %p291 = por %p289, %p290
    %p292 = scmp.ne.s32.totalorder %s284, %s287
    %p293 = scmp.eq.s32.totalorder %s17, 0
    %p294 = por %p292, %p293
    %p295 = scmp.ne.s32.totalorder %s284, %s287
    %p296 = scmp.eq.s32.totalorder %s22, 3
    %p297 = por %p295, %p296
    %p298 = scmp.ne.s32.totalorder %s287, %s288
    %p299 = scmp.eq.s32.totalorder %s22, 0
    %p300 = por %p298, %p299
    %p301 = scmp.ne.s32.totalorder %s287, %s288
    %p302 = scmp.eq.s32.totalorder %s23, 3
    %p303 = por %p301, %p302
    %p305 = scmp.ne.s32.totalorder %s288, %s304
    %p306 = scmp.eq.s32.totalorder %s23, 0
    %p307 = por %p305, %p306
    %p308 = scmp.le.s32.totalorder 1, %s17
    %p309 = scmp.lt.s32.totalorder %s17, 5
    %p310 = pnand %p308, %p309
    %p311 = pneg %p310
    // Predicated region
    $region9: #{ultrasr_forward.3} parent=5 // pred_check
      _
    $region10: #{ultrasr_forward.3} parent=5 // pred_check_branch
      %313 = sbr.rel (%p310) target = $region12
    $region11: #{ultrasr_forward.3} parent=5 // pred_region
      %s314 = ssub.s32 %s17, 1
      // Predicated region
      $region13: #{ultrasr_forward.3} parent=11 // pred_check
        %p315 = pneg %p106
      $region14: #{ultrasr_forward.3} parent=11 // pred_check_branch
        %317 = sbr.rel (%p315) target = $region16
      $region15: #{ultrasr_forward.3} parent=11 // pred_region
        _
      $region16: #{ultrasr_forward.3} parent=11 // pred_fallthru
        _
      // Predicated region
      $region17: #{ultrasr_forward.3} parent=11 // pred_check
        %p318 = pneg %p127
      $region18: #{ultrasr_forward.3} parent=11 // pred_check_branch
        %320 = sbr.rel (%p318) target = $region20
      $region19: #{ultrasr_forward.3} parent=11 // pred_region
        _
      $region20: #{ultrasr_forward.3} parent=11 // pred_fallthru
        _
      // Predicated region
      $region21: #{ultrasr_forward.3} parent=11 // pred_check
        %p321 = pneg %p148
      $region22: #{ultrasr_forward.3} parent=11 // pred_check_branch
        %323 = sbr.rel (%p321) target = $region24
      $region23: #{ultrasr_forward.3} parent=11 // pred_region
        _
      $region24: #{ultrasr_forward.3} parent=11 // pred_fallthru
        _
      // Predicated region
      $region25: #{ultrasr_forward.3} parent=11 // pred_check
        %p324 = pneg %p169
      $region26: #{ultrasr_forward.3} parent=11 // pred_check_branch
        %326 = sbr.rel (%p324) target = $region28
      $region27: #{ultrasr_forward.3} parent=11 // pred_region
        _
      $region28: #{ultrasr_forward.3} parent=11 // pred_fallthru
        _
      // Predicated region
      $region29: #{ultrasr_forward.3} parent=11 // pred_check
        %p327 = pneg %p190
      $region30: #{ultrasr_forward.3} parent=11 // pred_check_branch
        %329 = sbr.rel (%p327) target = $region32
      $region31: #{ultrasr_forward.3} parent=11 // pred_region
        _
      $region32: #{ultrasr_forward.3} parent=11 // pred_fallthru
        _
      // Predicated region
      $region33: #{ultrasr_forward.3} parent=11 // pred_check
        %p330 = pneg %p211
      $region34: #{ultrasr_forward.3} parent=11 // pred_check_branch
        %332 = sbr.rel (%p330) target = $region36
      $region35: #{ultrasr_forward.3} parent=11 // pred_region
        _
      $region36: #{ultrasr_forward.3} parent=11 // pred_fallthru
        _
      // Predicated region
      $region37: #{ultrasr_forward.3} parent=11 // pred_check
        %p333 = pneg %p232
      $region38: #{ultrasr_forward.3} parent=11 // pred_check_branch
        %335 = sbr.rel (%p333) target = $region40
      $region39: #{ultrasr_forward.3} parent=11 // pred_region
        _
      $region40: #{ultrasr_forward.3} parent=11 // pred_fallthru
        _
      // Predicated region
      $region41: #{ultrasr_forward.3} parent=11 // pred_check
        %p336 = pneg %p253
      $region42: #{ultrasr_forward.3} parent=11 // pred_check_branch
        %338 = sbr.rel (%p336) target = $region44
      $region43: #{ultrasr_forward.3} parent=11 // pred_region
        _
      $region44: #{ultrasr_forward.3} parent=11 // pred_fallthru
        _
      // Predicated region
      $region45: #{ultrasr_forward.3} parent=11 // pred_check
        %p339 = pneg %p274
      $region46: #{ultrasr_forward.3} parent=11 // pred_check_branch
        %341 = sbr.rel (%p339) target = $region48
      $region47: #{ultrasr_forward.3} parent=11 // pred_region
        _
      $region48: #{ultrasr_forward.3} parent=11 // pred_fallthru
        _
    $region12: #{ultrasr_forward.3} parent=5 // pred_fallthru
      _
    %p342 = scmp.lt.s32.totalorder %s17, 4
    // Predicated region
    $region49: #{ultrasr_forward.3} parent=5 // pred_check
      %p343 = pneg %p342
    $region50: #{ultrasr_forward.3} parent=5 // pred_check_branch
      %345 = sbr.rel (%p343) target = $region52
    $region51: #{ultrasr_forward.3} parent=5 // pred_region
      // Predicated region
      $region53: #{ultrasr_forward.3} parent=51 // pred_check
        %p346 = pneg %p51
      $region54: #{ultrasr_forward.3} parent=51 // pred_check_branch
        %348 = sbr.rel (%p346) target = $region56
      $region55: #{ultrasr_forward.3} parent=51 // pred_region
        %p349 = scmp.lt.s32.totalorder %s25, 3
        %s350 = scalar_select %p349, %s25, 3
        %p351 = scmp.lt.s32.totalorder %s24, 0
        %s352 = scalar_select %p351, %s24, 0
        %s353 = smul.addr %s350, 9
        %s354 = sadd.s32 %s352, %s353
        %s355 = smul.addr %s354, 4
        %s356 = scalar_lea.vmem %s0, %s355
      $region56: #{ultrasr_forward.3} parent=51 // pred_fallthru
        _
      // Predicated region
      $region57: #{ultrasr_forward.3} parent=51 // pred_check
        %p357 = pneg %p79
      $region58: #{ultrasr_forward.3} parent=51 // pred_check_branch
        %359 = sbr.rel (%p357) target = $region60
      $region59: #{ultrasr_forward.3} parent=51 // pred_region
        %p360 = scmp.lt.s32.totalorder %s25, 3
        %s361 = scalar_select %p360, %s25, 3
        %p362 = scmp.lt.s32.totalorder %s24, 0
        %s363 = scalar_select %p362, %s24, 0
        %s364 = sadd.s32 %s363, %s361
        %s365 = smul.addr %s364, 4
        %s366 = scalar_lea.vmem %s1, %s365
      $region60: #{ultrasr_forward.3} parent=51 // pred_fallthru
        _
    $region52: #{ultrasr_forward.3} parent=5 // pred_fallthru
      _
    %p367 = scmp.le.s32.totalorder 1, %s17
    %p368 = scmp.lt.s32.totalorder %s17, 5
    %p369 = pnand %p367, %p368
    %p370 = pneg %p369
    // Predicated region
    $region61: #{ultrasr_forward.3} parent=5 // pred_check
      _
    $region62: #{ultrasr_forward.3} parent=5 // pred_check_branch
      %372 = sbr.rel (%p369) target = $region64
    $region63: #{ultrasr_forward.3} parent=5 // pred_region
      %s373 = ssub.s32 %s17, 1
      %p374 = scmp.lt.s32.totalorder %s27, 3
      %s375 = scalar_select %p374, %s27, 3
      %p376 = scmp.lt.s32.totalorder %s26, 0
      %s377 = scalar_select %p376, %s26, 0
      %s378 = smul.addr %s375, 9
      %s379 = sadd.s32 %s377, %s378
      %s380 = smul.addr %s379, 4
      %s381 = scalar_lea.vmem %s0, %s380
      %p382 = pneg %p57
      %p383 = pneg %p54
      %p384 = scmp.lt.s32.totalorder %s27, 3
      %s385 = scalar_select %p384, %s27, 3
      %p386 = scmp.lt.s32.totalorder %s26, 0
      %s387 = scalar_select %p386, %s26, 0
      %s388 = sadd.s32 %s387, %s385
      %s389 = smul.addr %s388, 4
      %s390 = scalar_lea.vmem %s1, %s389
      %p391 = pneg %p85
      %p392 = pneg %p82
      %p393 = pneg %p106
      %p394 = pneg %p103
      %p395 = pneg %p127
      %p396 = pneg %p124
      %p397 = pneg %p148
      %p398 = pneg %p145
      %p399 = pneg %p169
      %p400 = pneg %p166
      %p401 = pneg %p190
      %p402 = pneg %p187
      %p403 = pneg %p211
      %p404 = pneg %p208
      %p405 = pneg %p232
      %p406 = pneg %p229
      %p407 = pneg %p253
      %p408 = pneg %p250
      %p409 = pneg %p274
      %p410 = pneg %p271
      %p411 = pneg %p300
      %p412 = pneg %p297
      %p413 = scmp.lt.s32.totalorder %s26, 0
      %s414 = scalar_select %p413, %s26, 0
      %s415 = smul.addr %s414, 8
      %s416 = scalar_lea.vmem %s11, %s415
      %p417 = scmp.lt.s32.totalorder %s27, 3
      %s418 = scalar_select %p417, %s27, 3
      %p419 = scmp.lt.s32.totalorder %s26, 0
      %s420 = scalar_select %p419, %s26, 0
      %s421 = smul.addr %s418, 9
      %s422 = sadd.s32 %s420, %s421
      %s423 = smul.addr %s422, 4
      %s424 = scalar_lea.vmem %s0, %s423
      %p425 = scmp.lt.s32.totalorder %s27, 3
      %s426 = scalar_select %p425, %s27, 3
      %p427 = scmp.lt.s32.totalorder %s26, 0
      %s428 = scalar_select %p427, %s26, 0
      %s429 = sadd.s32 %s428, %s426
      %s430 = smul.addr %s429, 4
      %s431 = scalar_lea.vmem %s1, %s430
      %p432 = scmp.lt.s32.totalorder %s26, 0
      %s433 = scalar_select %p432, %s26, 0
      %s434 = smul.addr %s433, 8
      %s435 = scalar_lea.vmem %s11, %s434
      %p437 = scmp.eq.s32.totalorder %s27, 0
      // Predicated region
      $region65: #{ultrasr_forward.3} parent=63 // pred_check
        %p438 = pneg %p437
      $region66: #{ultrasr_forward.3} parent=63 // pred_check_branch
        %440 = sbr.rel (%p438) target = $region68
      $region67: #{ultrasr_forward.3} parent=63 // pred_region
        %441 = vst [vmem:[#allocation2] sm:$0xff] 0.0
      $region68: #{ultrasr_forward.3} parent=63 // pred_fallthru
        _
      %v442 = vld [vmem:[%s424] sm:$0xf]
      %v443 = vld [vmem:[%s424 + $0x4] sm:$0xf]
      %v444 = vld [vmem:[%s424 + $0x8] sm:$0xf]
      %v445 = vld [vmem:[%s424 + $0xc] sm:$0xf]
      %v446 = vld [vmem:[%s424 + $0x10] sm:$0xf]
      %v447 = vld [vmem:[%s424 + $0x14] sm:$0xf]
      %v448 = vld [vmem:[%s424 + $0x18] sm:$0xf]
      %v449 = vld [vmem:[%s424 + $0x1c] sm:$0xf]
      %v450 = vld [vmem:[%s424 + $0x20] sm:$0xf]
      %v451 = vld [vmem:[%s431] sm:$0x7]
      %v452 = vld [vmem:[%s2] sm:$0xff]
      %v453 = vld [vmem:[%s2 + $0x8] sm:$0xff]
      %v454 = vld [vmem:[%s2 + $0x10] sm:$0xff]
      %v455 = vld [vmem:[%s2 + $0x18] sm:$0xf]
      %457 = vset.pattern.permute.xlu0 2
      %458 = vperm.xlu0 %457, %v452
      %v459 = vpop.permute.xlu0 %458
      %462 = vset.pattern.permute.xlu0 2
      %463 = vperm.xlu0 %462, %v453
      %v464 = vpop.permute.xlu0 %463
      %467 = vset.pattern.permute.xlu0 2
      %468 = vperm.xlu0 %467, %v454
      %v469 = vpop.permute.xlu0 %468
      %472 = vset.pattern.permute.xlu0 2
      %473 = vperm.xlu0 %472, %v455
      %v474 = vpop.permute.xlu0 %473
      %vm476 = vcmask 15360
      %v477 = vsel %vm476, %v452, 0
      %v479 = vsel %vm476, %v453, 0
      %v481 = vsel %vm476, %v454, 0
      %v483 = vsel %vm476, %v455, 0
      %vm485 = vcmask 1041408
      %v487 = vsel %vm485, %v451, 0
      %489 = vmatprep.subr.mxu0 0.0
      %490 = vmatpush1.msra.mxu0 %v487
      %491 = vmatprep.subr.mxu0 0.0
      %492 = vmatpush1.msra.mxu0 0.0
      %493 = vmatprep.subr.mxu0 0.0
      %494 = vmatpush1.msra.mxu0 0.0
      %495 = vmatprep.subr.mxu0 0.0
      %496 = vmatpush1.msra.mxu0 0.0
      %497 = vmatprep.subr.mxu0 0.0
      %498 = vmatpush1.msra.mxu0 0.0
      %499 = vmatprep.subr.mxu0 0.0
      %500 = vmatpush1.msra.mxu0 0.0
      %501 = vmatprep.subr.mxu0 0.0
      %502 = vmatpush1.msra.mxu0 0.0
      %503 = vmatprep.subr.mxu0 0.0
      %504 = vmatpush1.msra.mxu0 0.0
      %505 = vmatprep.subr.mxu0 0.0
      %506 = vmatpush1.msra.mxu0 0.0
      %507 = vmatprep.subr.mxu0 0.0
      %508 = vmatpush1.msra.mxu0 0.0
      %509 = vmatprep.subr.mxu0 0.0
      %510 = vmatpush1.msra.mxu0 0.0
      %511 = vmatprep.subr.mxu0 0.0
      %512 = vmatpush1.msra.mxu0 0.0
      %513 = vmatprep.subr.mxu0 0.0
      %514 = vmatpush1.msra.mxu0 0.0
      %515 = vmatprep.subr.mxu0 0.0
      %516 = vmatpush1.msra.mxu0 0.0
      %517 = vmatprep.subr.mxu0 0.0
      %518 = vmatpush1.msra.mxu0 0.0
      %519 = vmatprep.subr.mxu0 0.0
      %520 = vmatpush1.msra.mxu0 0.0
      %521 = vmatprep.subr.mxu0 0.0
      %522 = vmatpush1.msra.mxu0 0.0
      %523 = vmatprep.subr.mxu0 0.0
      %524 = vmatpush1.msra.mxu0 0.0
      %525 = vmatprep.subr.mxu0 0.0
      %526 = vmatpush1.msra.mxu0 0.0
      %527 = vmatprep.subr.mxu0 0.0
      %528 = vmatpush1.msra.mxu0 0.0
      %529 = vmatprep.subr.mxu0 0.0
      %530 = vmatpush1.msra.mxu0 0.0
      %531 = vmatprep.subr.mxu0 0.0
      %532 = vmatpush1.msra.mxu0 0.0
      %533 = vmatprep.subr.mxu0 0.0
      %534 = vmatpush1.msra.mxu0 0.0
      %535 = vmatprep.subr.mxu0 0.0
      %536 = vmatpush1.msra.mxu0 0.0
      %537 = vmatprep.subr.mxu0 0.0
      %538 = vmatpush1.msra.mxu0 0.0
      %539 = vmatprep.subr.mxu0 0.0
      %540 = vmatpush1.msra.mxu0 0.0
      %541 = vmatprep.subr.mxu0 0.0
      %542 = vmatpush1.msra.mxu0 0.0
      %543 = vmatprep.subr.mxu0 0.0
      %544 = vmatpush1.msra.mxu0 0.0
      %545 = vmatprep.subr.mxu0 0.0
      %546 = vmatpush1.msra.mxu0 0.0
      %547 = vmatprep.subr.mxu0 0.0
      %548 = vmatpush1.msra.mxu0 0.0
      %549 = vmatprep.subr.mxu0 0.0
      %550 = vmatpush1.msra.mxu0 0.0
      %551 = vmatprep.subr.mxu0 0.0
      %552 = vmatpush1.msra.mxu0 0.0
      %553 = vmatprep.mubr.f32.mxu0 0.0
      %554 = vmatmul.mubr.f32.gmra.mrb[0].mxu0 %v477
      %v555 = vpop.f32.mrb[0].mxu0
      %v556 = vadd.f32 %v459, %v555
      %v557 = vpop.f32.mrb[0].mxu0
      %558 = vmatprep.mubr.f32.mxu0 0.0
      %559 = vmatmul.mubr.f32.gmra.mrb[0].mxu0 %v479
      %v560 = vpop.f32.mrb[0].mxu0
      %v561 = vadd.f32 %v464, %v560
      %v562 = vpop.f32.mrb[0].mxu0
      %563 = vmatprep.mubr.f32.mxu0 0.0
      %564 = vmatmul.mubr.f32.gmra.mrb[0].mxu0 %v481
      %v565 = vpop.f32.mrb[0].mxu0
      %v566 = vadd.f32 %v469, %v565
      %v567 = vpop.f32.mrb[0].mxu0
      %568 = vmatprep.mubr.f32.mxu0 0.0
      %569 = vmatmul.mubr.f32.gmra.mrb[0].mxu0 %v483
      %v570 = vpop.f32.mrb[0].mxu0
      %v571 = vadd.f32 %v474, %v570
      %v572 = vpop.f32.mrb[0].mxu0
      %573 = vdwg.mxu0
      %v574 = vand.u32 2147483647, %v556
      %vm575 = vcmp.le.f32.partialorder %v574, 0.7853982
      %vm576 = vcmp.lt.s32.totalorder %v556, 0
      %v577 = vand.u32 %v556, 2139095040
      %v578 = vshrl.u32 %v577, 23
      %v579 = vsub.s32 %v578, 127
      %v580 = vand.u32 2147483647, %v556
      %v581 = vand.u32 %v580, 8388607
      %v582 = vor.u32 %v581, 8388608
      %v583 = vsub.s32 0, %v582
      %v584 = vadd.s32 %v579, 1
      %vm585 = vcmp.gt.s32.totalorder %v584, 0
      %v586 = vsel %vm585, %v584, 0
      %v587 = vshrl.u32 %v586, 5
      %v588 = vand.u32 %v586, 31
      %v589 = vsub.s32 32, %v588
      %v590 = vshrl.u32 683565275, %v589
      %v591 = vshll.u32 683565275, %v588
      %v592 = vshrl.u32 2475754826, %v589
      %v593 = vor.u32 %v591, %v592
      %v594 = vshll.u32 2475754826, %v588
      %v595 = vshrl.u32 2131351028, %v589
      %v596 = vor.u32 %v594, %v595
      %v597 = vshll.u32 2131351028, %v588
      %v598 = vshrl.u32 2102212464, %v589
      %v599 = vor.u32 %v597, %v598
      %v600 = vshll.u32 2102212464, %v588
      %v601 = vshrl.u32 920167782, %v589
      %v602 = vor.u32 %v600, %v601
      %v603 = vshll.u32 920167782, %v588
      %v604 = vshrl.u32 1326507024, %v589
      %v605 = vor.u32 %v603, %v604
      %vm606 = vcmp.lt.s32.totalorder %v587, 1
      %vm607 = vcmp.lt.s32.totalorder %v587, 2
      %vm608 = vcmp.lt.s32.totalorder %v587, 3
      %vm609 = vcmp.lt.s32.totalorder %v587, 4
      %v610 = vsel %vm606, %v590, %v593
      %v611 = vsel %vm609, %v599, 2102212464
      %v612 = vsel %vm608, %v596, %v611
      %v613 = vsel %vm607, %v610, %v612
      %v614 = vsel %vm606, %v593, %v596
      %v615 = vsel %vm609, %v602, 920167782
      %v616 = vsel %vm608, %v599, %v615
      %v617 = vsel %vm607, %v614, %v616
      %v618 = vsel %vm606, %v596, %v599
      %v619 = vsel %vm609, %v605, 1326507024
      %v620 = vsel %vm608, %v602, %v619
      %v621 = vsel %vm607, %v618, %v620
      %v622 = vshll.u32 %v582, 8
      %v623 = vmul.u32.u64.compose %v622, %v621
      %v624 = vextract.low.u32 %v623
      %v625 = vextract.high.u32 %v623
      %v626 = vmul.u32.u64.compose %v622, %v617
      %v627 = vextract.low.u32 %v626
      %v628 = vextract.high.u32 %v626
      %v629 = vmul.u32 %v622, %v613
      %v630 = vadd.s32 %v625, %v627
      %vm631 = vc.u32 %v625, %v627
      %v632 = vadd.s32 %v628, 1
      %v633 = vsel %vm631, %v632, %v628
      %v634 = vadd.s32 %v629, %v633
      %v635 = vadd.s32 %v634, 536870912
      %v636 = vshrl.u32 %v635, 30
      %v637 = vshll.u32 %v636, 30
      %v638 = vsub.s32 %v634, %v637
      %vm639 = vcmp.lt.s32.totalorder %v638, 0
      %v640 = vsub.s32 0, %v638
      %v641 = vsel %vm639, %v640, %v638
      %v642 = vclz %v641
      %v643 = vsub.s32 %v642, 2
      %vm644 = vcmp.gt.s32.totalorder 0, %v643
      %v645 = vsel %vm644, 0, %v643
      %v646 = vsub.s32 32, %v645
      %v647 = vshll.u32 %v638, %v645
      %v648 = vshrl.u32 %v630, %v646
      %v649 = vor.u32 %v647, %v648
      %v650 = vsub.s32 4294967266, %v645
      %v651 = vadd.s32 %v650, 127
      %v652 = vshll.u32 %v651, 23
      %v653 = vor.u32 4788187, %v652
      %v654 = vand.u32 2147483647, %v653
      %v656 = vcvt.s32.f32 %v649
      %v657 = vmul.f32 %v656, %v654
      %v658 = vxor.u32 %v657, 2147483648
      %v659 = vsel %vm576, %v658, %v657
      %v660 = vsub.s32 4, %v636
      %v661 = vsel %vm576, %v660, %v636
      %v662 = vsel %vm575, %v556, %v659
      %v663 = vsel %vm575, 0, %v661
      %v664 = vcosq.f32.pop %v662
      %v665 = vsinq.f32.pop %v662
      %vm666 = vweird.f32 %v556
      %v667 = vadd.s32 %v663, 3
      %v668 = vand.u32 %v667, 3
      %vm669 = vcmp.lt.s32.totalorder %v668, 2
      %vm670 = vcmp.eq.s32.totalorder %v668, 0
      %v671 = vxor.u32 %v665, 2147483648
      %v672 = vsel %vm670, %v664, %v671
      %vm673 = vcmp.eq.s32.totalorder %v668, 2
      %v674 = vxor.u32 %v664, 2147483648
      %v675 = vsel %vm673, %v674, %v665
      %v676 = vsel %vm669, %v672, %v675
      %v677 = vsel %vm666, nan, %v676
      %v678 = vand.u32 2147483647, %v561
      %vm679 = vcmp.le.f32.partialorder %v678, 0.7853982
      %vm680 = vcmp.lt.s32.totalorder %v561, 0
      %v681 = vand.u32 %v561, 2139095040
      %v682 = vshrl.u32 %v681, 23
      %v683 = vsub.s32 %v682, 127
      %v684 = vand.u32 2147483647, %v561
      %v685 = vand.u32 %v684, 8388607
      %v686 = vor.u32 %v685, 8388608
      %v687 = vsub.s32 0, %v686
      %v688 = vadd.s32 %v683, 1
      %vm689 = vcmp.gt.s32.totalorder %v688, 0
      %v690 = vsel %vm689, %v688, 0
      %v691 = vshrl.u32 %v690, 5
      %v692 = vand.u32 %v690, 31
      %v693 = vsub.s32 32, %v692
      %v694 = vshrl.u32 683565275, %v693
      %v695 = vshll.u32 683565275, %v692
      %v696 = vshrl.u32 2475754826, %v693
      %v697 = vor.u32 %v695, %v696
      %v698 = vshll.u32 2475754826, %v692
      %v699 = vshrl.u32 2131351028, %v693
      %v700 = vor.u32 %v698, %v699
      %v701 = vshll.u32 2131351028, %v692
      %v702 = vshrl.u32 2102212464, %v693
      %v703 = vor.u32 %v701, %v702
      %v704 = vshll.u32 2102212464, %v692
      %v705 = vshrl.u32 920167782, %v693
      %v706 = vor.u32 %v704, %v705
      %v707 = vshll.u32 920167782, %v692
      %v708 = vshrl.u32 1326507024, %v693
      %v709 = vor.u32 %v707, %v708
      %vm710 = vcmp.lt.s32.totalorder %v691, 1
      %vm711 = vcmp.lt.s32.totalorder %v691, 2
      %vm712 = vcmp.lt.s32.totalorder %v691, 3
      %vm713 = vcmp.lt.s32.totalorder %v691, 4
      %v714 = vsel %vm710, %v694, %v697
      %v715 = vsel %vm713, %v703, 2102212464
      %v716 = vsel %vm712, %v700, %v715
      %v717 = vsel %vm711, %v714, %v716
      %v718 = vsel %vm710, %v697, %v700
      %v719 = vsel %vm713, %v706, 920167782
      %v720 = vsel %vm712, %v703, %v719
      %v721 = vsel %vm711, %v718, %v720
      %v722 = vsel %vm710, %v700, %v703
      %v723 = vsel %vm713, %v709, 1326507024
      %v724 = vsel %vm712, %v706, %v723
      %v725 = vsel %vm711, %v722, %v724
      %v726 = vshll.u32 %v686, 8
      %v727 = vmul.u32.u64.compose %v726, %v725
      %v728 = vextract.low.u32 %v727
      %v729 = vextract.high.u32 %v727
      %v730 = vmul.u32.u64.compose %v726, %v721
      %v731 = vextract.low.u32 %v730
      %v732 = vextract.high.u32 %v730
      %v733 = vmul.u32 %v726, %v717
      %v734 = vadd.s32 %v729, %v731
      %vm735 = vc.u32 %v729, %v731
      %v736 = vadd.s32 %v732, 1
      %v737 = vsel %vm735, %v736, %v732
      %v738 = vadd.s32 %v733, %v737
      %v739 = vadd.s32 %v738, 536870912
      %v740 = vshrl.u32 %v739, 30
      %v741 = vshll.u32 %v740, 30
      %v742 = vsub.s32 %v738, %v741
      %vm743 = vcmp.lt.s32.totalorder %v742, 0
      %v744 = vsub.s32 0, %v742
      %v745 = vsel %vm743, %v744, %v742
      %v746 = vclz %v745
      %v747 = vsub.s32 %v746, 2
      %vm748 = vcmp.gt.s32.totalorder 0, %v747
      %v749 = vsel %vm748, 0, %v747
      %v750 = vsub.s32 32, %v749
      %v751 = vshll.u32 %v742, %v749
      %v752 = vshrl.u32 %v734, %v750
      %v753 = vor.u32 %v751, %v752
      %v754 = vsub.s32 4294967266, %v749
      %v755 = vadd.s32 %v754, 127
      %v756 = vshll.u32 %v755, 23
      %v757 = vor.u32 4788187, %v756
      %v758 = vand.u32 2147483647, %v757
      %v760 = vcvt.s32.f32 %v753
      %v761 = vmul.f32 %v760, %v758
      %v762 = vxor.u32 %v761, 2147483648
      %v763 = vsel %vm680, %v762, %v761
      %v764 = vsub.s32 4, %v740
      %v765 = vsel %vm680, %v764, %v740
      %v766 = vsel %vm679, %v561, %v763
      %v767 = vsel %vm679, 0, %v765
      %v768 = vcosq.f32.pop %v766
      %v769 = vsinq.f32.pop %v766
      %vm770 = vweird.f32 %v561
      %v771 = vadd.s32 %v767, 3
      %v772 = vand.u32 %v771, 3
      %vm773 = vcmp.lt.s32.totalorder %v772, 2
      %vm774 = vcmp.eq.s32.totalorder %v772, 0
      %v775 = vxor.u32 %v769, 2147483648
      %v776 = vsel %vm774, %v768, %v775
      %vm777 = vcmp.eq.s32.totalorder %v772, 2
      %v778 = vxor.u32 %v768, 2147483648
      %v779 = vsel %vm777, %v778, %v769
      %v780 = vsel %vm773, %v776, %v779
      %v781 = vsel %vm770, nan, %v780
      %v782 = vand.u32 2147483647, %v566
      %vm783 = vcmp.le.f32.partialorder %v782, 0.7853982
      %vm784 = vcmp.lt.s32.totalorder %v566, 0
      %v785 = vand.u32 %v566, 2139095040
      %v786 = vshrl.u32 %v785, 23
      %v787 = vsub.s32 %v786, 127
      %v788 = vand.u32 2147483647, %v566
      %v789 = vand.u32 %v788, 8388607
      %v790 = vor.u32 %v789, 8388608
      %v791 = vsub.s32 0, %v790
      %v792 = vadd.s32 %v787, 1
      %vm793 = vcmp.gt.s32.totalorder %v792, 0
      %v794 = vsel %vm793, %v792, 0
      %v795 = vshrl.u32 %v794, 5
      %v796 = vand.u32 %v794, 31
      %v797 = vsub.s32 32, %v796
      %v798 = vshrl.u32 683565275, %v797
      %v799 = vshll.u32 683565275, %v796
      %v800 = vshrl.u32 2475754826, %v797
      %v801 = vor.u32 %v799, %v800
      %v802 = vshll.u32 2475754826, %v796
      %v803 = vshrl.u32 2131351028, %v797
      %v804 = vor.u32 %v802, %v803
      %v805 = vshll.u32 2131351028, %v796
      %v806 = vshrl.u32 2102212464, %v797
      %v807 = vor.u32 %v805, %v806
      %v808 = vshll.u32 2102212464, %v796
      %v809 = vshrl.u32 920167782, %v797
      %v810 = vor.u32 %v808, %v809
      %v811 = vshll.u32 920167782, %v796
      %v812 = vshrl.u32 1326507024, %v797
      %v813 = vor.u32 %v811, %v812
      %vm814 = vcmp.lt.s32.totalorder %v795, 1
      %vm815 = vcmp.lt.s32.totalorder %v795, 2
      %vm816 = vcmp.lt.s32.totalorder %v795, 3
      %vm817 = vcmp.lt.s32.totalorder %v795, 4
      %v818 = vsel %vm814, %v798, %v801
      %v819 = vsel %vm817, %v807, 2102212464
      %v820 = vsel %vm816, %v804, %v819
      %v821 = vsel %vm815, %v818, %v820
      %v822 = vsel %vm814, %v801, %v804
      %v823 = vsel %vm817, %v810, 920167782
      %v824 = vsel %vm816, %v807, %v823
      %v825 = vsel %vm815, %v822, %v824
      %v826 = vsel %vm814, %v804, %v807
      %v827 = vsel %vm817, %v813, 1326507024
      %v828 = vsel %vm816, %v810, %v827
      %v829 = vsel %vm815, %v826, %v828
      %v830 = vshll.u32 %v790, 8
      %v831 = vmul.u32.u64.compose %v830, %v829
      %v832 = vextract.low.u32 %v831
      %v833 = vextract.high.u32 %v831
      %v834 = vmul.u32.u64.compose %v830, %v825
      %v835 = vextract.low.u32 %v834
      %v836 = vextract.high.u32 %v834
      %v837 = vmul.u32 %v830, %v821
      %v838 = vadd.s32 %v833, %v835
      %vm839 = vc.u32 %v833, %v835
      %v840 = vadd.s32 %v836, 1
      %v841 = vsel %vm839, %v840, %v836
      %v842 = vadd.s32 %v837, %v841
      %v843 = vadd.s32 %v842, 536870912
      %v844 = vshrl.u32 %v843, 30
      %v845 = vshll.u32 %v844, 30
      %v846 = vsub.s32 %v842, %v845
      %vm847 = vcmp.lt.s32.totalorder %v846, 0
      %v848 = vsub.s32 0, %v846
      %v849 = vsel %vm847, %v848, %v846
      %v850 = vclz %v849
      %v851 = vsub.s32 %v850, 2
      %vm852 = vcmp.gt.s32.totalorder 0, %v851
      %v853 = vsel %vm852, 0, %v851
      %v854 = vsub.s32 32, %v853
      %v855 = vshll.u32 %v846, %v853
      %v856 = vshrl.u32 %v838, %v854
      %v857 = vor.u32 %v855, %v856
      %v858 = vsub.s32 4294967266, %v853
      %v859 = vadd.s32 %v858, 127
      %v860 = vshll.u32 %v859, 23
      %v861 = vor.u32 4788187, %v860
      %v862 = vand.u32 2147483647, %v861
      %v864 = vcvt.s32.f32 %v857
      %v865 = vmul.f32 %v864, %v862
      %v866 = vxor.u32 %v865, 2147483648
      %v867 = vsel %vm784, %v866, %v865
      %v868 = vsub.s32 4, %v844
      %v869 = vsel %vm784, %v868, %v844
      %v870 = vsel %vm783, %v566, %v867
      %v871 = vsel %vm783, 0, %v869
      %v872 = vcosq.f32.pop %v870
      %v873 = vsinq.f32.pop %v870
      %vm874 = vweird.f32 %v566
      %v875 = vadd.s32 %v871, 3
      %v876 = vand.u32 %v875, 3
      %vm877 = vcmp.lt.s32.totalorder %v876, 2
      %vm878 = vcmp.eq.s32.totalorder %v876, 0
      %v879 = vxor.u32 %v873, 2147483648
      %v880 = vsel %vm878, %v872, %v879
      %vm881 = vcmp.eq.s32.totalorder %v876, 2
      %v882 = vxor.u32 %v872, 2147483648
      %v883 = vsel %vm881, %v882, %v873
      %v884 = vsel %vm877, %v880, %v883
      %v885 = vsel %vm874, nan, %v884
      %v886 = vand.u32 2147483647, %v571
      %vm887 = vcmp.le.f32.partialorder %v886, 0.7853982
      %vm888 = vcmp.lt.s32.totalorder %v571, 0
      %v889 = vand.u32 %v571, 2139095040
      %v890 = vshrl.u32 %v889, 23
      %v891 = vsub.s32 %v890, 127
      %v892 = vand.u32 2147483647, %v571
      %v893 = vand.u32 %v892, 8388607
      %v894 = vor.u32 %v893, 8388608
      %v895 = vsub.s32 0, %v894
      %v896 = vadd.s32 %v891, 1
      %vm897 = vcmp.gt.s32.totalorder %v896, 0
      %v898 = vsel %vm897, %v896, 0
      %v899 = vshrl.u32 %v898, 5
      %v900 = vand.u32 %v898, 31
      %v901 = vsub.s32 32, %v900
      %v902 = vshrl.u32 683565275, %v901
      %v903 = vshll.u32 683565275, %v900
      %v904 = vshrl.u32 2475754826, %v901
      %v905 = vor.u32 %v903, %v904
      %v906 = vshll.u32 2475754826, %v900
      %v907 = vshrl.u32 2131351028, %v901
      %v908 = vor.u32 %v906, %v907
      %v909 = vshll.u32 2131351028, %v900
      %v910 = vshrl.u32 2102212464, %v901
      %v911 = vor.u32 %v909, %v910
      %v912 = vshll.u32 2102212464, %v900
      %v913 = vshrl.u32 920167782, %v901
      %v914 = vor.u32 %v912, %v913
      %v915 = vshll.u32 920167782, %v900
      %v916 = vshrl.u32 1326507024, %v901
      %v917 = vor.u32 %v915, %v916
      %vm918 = vcmp.lt.s32.totalorder %v899, 1
      %vm919 = vcmp.lt.s32.totalorder %v899, 2
      %vm920 = vcmp.lt.s32.totalorder %v899, 3
      %vm921 = vcmp.lt.s32.totalorder %v899, 4
      %v922 = vsel %vm918, %v902, %v905
      %v923 = vsel %vm921, %v911, 2102212464
      %v924 = vsel %vm920, %v908, %v923
      %v925 = vsel %vm919, %v922, %v924
      %v926 = vsel %vm918, %v905, %v908
      %v927 = vsel %vm921, %v914, 920167782
      %v928 = vsel %vm920, %v911, %v927
      %v929 = vsel %vm919, %v926, %v928
      %v930 = vsel %vm918, %v908, %v911
      %v931 = vsel %vm921, %v917, 1326507024
      %v932 = vsel %vm920, %v914, %v931
      %v933 = vsel %vm919, %v930, %v932
      %v934 = vshll.u32 %v894, 8
      %v935 = vmul.u32.u64.compose %v934, %v933
      %v936 = vextract.low.u32 %v935
      %v937 = vextract.high.u32 %v935
      %v938 = vmul.u32.u64.compose %v934, %v929
      %v939 = vextract.low.u32 %v938
      %v940 = vextract.high.u32 %v938
      %v941 = vmul.u32 %v934, %v925
      %v942 = vadd.s32 %v937, %v939
      %vm943 = vc.u32 %v937, %v939
      %v944 = vadd.s32 %v940, 1
      %v945 = vsel %vm943, %v944, %v940
      %v946 = vadd.s32 %v941, %v945
      %v947 = vadd.s32 %v946, 536870912
      %v948 = vshrl.u32 %v947, 30
      %v949 = vshll.u32 %v948, 30
      %v950 = vsub.s32 %v946, %v949
      %vm951 = vcmp.lt.s32.totalorder %v950, 0
      %v952 = vsub.s32 0, %v950
      %v953 = vsel %vm951, %v952, %v950
      %v954 = vclz %v953
      %v955 = vsub.s32 %v954, 2
      %vm956 = vcmp.gt.s32.totalorder 0, %v955
      %v957 = vsel %vm956, 0, %v955
      %v958 = vsub.s32 32, %v957
      %v959 = vshll.u32 %v950, %v957
      %v960 = vshrl.u32 %v942, %v958
      %v961 = vor.u32 %v959, %v960
      %v962 = vsub.s32 4294967266, %v957
      %v963 = vadd.s32 %v962, 127
      %v964 = vshll.u32 %v963, 23
      %v965 = vor.u32 4788187, %v964
      %v966 = vand.u32 2147483647, %v965
      %v968 = vcvt.s32.f32 %v961
      %v969 = vmul.f32 %v968, %v966
      %v970 = vxor.u32 %v969, 2147483648
      %v971 = vsel %vm888, %v970, %v969
      %v972 = vsub.s32 4, %v948
      %v973 = vsel %vm888, %v972, %v948
      %v974 = vsel %vm887, %v571, %v971
      %v975 = vsel %vm887, 0, %v973
      %v976 = vcosq.f32.pop %v974
      %v977 = vsinq.f32.pop %v974
      %vm978 = vweird.f32 %v571
      %v979 = vadd.s32 %v975, 3
      %v980 = vand.u32 %v979, 3
      %vm981 = vcmp.lt.s32.totalorder %v980, 2
      %vm982 = vcmp.eq.s32.totalorder %v980, 0
      %v983 = vxor.u32 %v977, 2147483648
      %v984 = vsel %vm982, %v976, %v983
      %vm985 = vcmp.eq.s32.totalorder %v980, 2
      %v986 = vxor.u32 %v976, 2147483648
      %v987 = vsel %vm985, %v986, %v977
      %v988 = vsel %vm981, %v984, %v987
      %v989 = vsel %vm978, nan, %v988
      %v990 = vpack.c.bf16 %v781, %v677
      %v991 = vpack.c.bf16 %v989, %v885
      %v992 = vld [vmem:[%s10] sm:$0xff]
      %v993 = vld [vmem:[%s10 + $0x8] sm:$0xff]
      %v994 = vld [vmem:[%s10 + $0x10] sm:$0xff]
      %v995 = vld [vmem:[%s10 + $0x18] sm:$0xff]
      %v996 = vld [vmem:[%s10 + $0x20] sm:$0xff]
      %v997 = vld [vmem:[%s10 + $0x28] sm:$0xff]
      %v998 = vld [vmem:[%s10 + $0x30] sm:$0xff]
      %v999 = vld [vmem:[%s10 + $0x38] sm:$0xff]
      %v1000 = vld [vmem:[%s10 + $0x40] sm:$0xff]
      %v1001 = vld [vmem:[%s10 + $0x48] sm:$0xff]
      %v1002 = vld [vmem:[%s10 + $0x50] sm:$0xff]
      %v1003 = vld [vmem:[%s10 + $0x58] sm:$0xff]
      %v1004 = vld [vmem:[%s10 + $0x60] sm:$0xff]
      %v1005 = vld [vmem:[%s10 + $0x68] sm:$0xff]
      %v1006 = vld [vmem:[%s10 + $0x70] sm:$0xff]
      %v1007 = vld [vmem:[%s10 + $0x78] sm:$0xff]
      %v1008 = vld [vmem:[%s10 + $0x80] sm:$0xff]
      %v1009 = vld [vmem:[%s3] sm:$0xf]
      %v1010 = vld [vmem:[%s3 + $0x4] sm:$0xf]
      %v1011 = vld [vmem:[%s3 + $0x8] sm:$0xf]
      %v1012 = vld [vmem:[%s3 + $0xc] sm:$0xf]
      %v1013 = vld [vmem:[%s3 + $0x10] sm:$0xf]
      %v1014 = vld [vmem:[%s3 + $0x14] sm:$0xf]
      %v1015 = vld [vmem:[%s3 + $0x18] sm:$0xf]
      %v1016 = vld [vmem:[%s3 + $0x1c] sm:$0xf]
      %v1017 = vld [vmem:[%s4] sm:$0xff]
      %v1018 = vld [vmem:[%s4 + $0x8] sm:$0xff]
      %v1019 = vld [vmem:[%s4 + $0x10] sm:$0xff]
      %v1020 = vld [vmem:[%s4 + $0x18] sm:$0xff]
      %v1021 = vld [vmem:[%s4 + $0x20] sm:$0xff]
      %v1022 = vld [vmem:[%s4 + $0x28] sm:$0xff]
      %v1023 = vld [vmem:[%s4 + $0x30] sm:$0xff]
      %v1024 = vld [vmem:[%s4 + $0x38] sm:$0xff]
      %v1026 = vsel %vm476, %v1017, 0
      %v1029 = vsel %vm476, %v1018, 0
      %v1032 = vsel %vm476, %v1019, 0
      %v1035 = vsel %vm476, %v1020, 0
      %v1038 = vsel %vm476, %v1021, 0
      %v1041 = vsel %vm476, %v1022, 0
      %v1044 = vsel %vm476, %v1023, 0
      %v1047 = vsel %vm476, %v1024, 0
      %1049 = vmatprep.subr.mxu0 0.0
      %1050 = vmatpush1.msra.mxu0 %v487
      %1051 = vmatprep.subr.mxu0 0.0
      %1052 = vmatpush1.msra.mxu0 0.0
      %1053 = vmatprep.subr.mxu0 0.0
      %1054 = vmatpush1.msra.mxu0 0.0
      %1055 = vmatprep.subr.mxu0 0.0
      %1056 = vmatpush1.msra.mxu0 0.0
      %1057 = vmatprep.subr.mxu0 0.0
      %1058 = vmatpush1.msra.mxu0 0.0
      %1059 = vmatprep.subr.mxu0 0.0
      %1060 = vmatpush1.msra.mxu0 0.0
      %1061 = vmatprep.subr.mxu0 0.0
      %1062 = vmatpush1.msra.mxu0 0.0
      %1063 = vmatprep.subr.mxu0 0.0
      %1064 = vmatpush1.msra.mxu0 0.0
      %1065 = vmatprep.subr.mxu0 0.0
      %1066 = vmatpush1.msra.mxu0 0.0
      %1067 = vmatprep.subr.mxu0 0.0
      %1068 = vmatpush1.msra.mxu0 0.0
      %1069 = vmatprep.subr.mxu0 0.0
      %1070 = vmatpush1.msra.mxu0 0.0
      %1071 = vmatprep.subr.mxu0 0.0
      %1072 = vmatpush1.msra.mxu0 0.0
      %1073 = vmatprep.subr.mxu0 0.0
      %1074 = vmatpush1.msra.mxu0 0.0
      %1075 = vmatprep.subr.mxu0 0.0
      %1076 = vmatpush1.msra.mxu0 0.0
      %1077 = vmatprep.subr.mxu0 0.0
      %1078 = vmatpush1.msra.mxu0 0.0
      %1079 = vmatprep.subr.mxu0 0.0
      %1080 = vmatpush1.msra.mxu0 0.0
      %1081 = vmatprep.subr.mxu0 0.0
      %1082 = vmatpush1.msra.mxu0 0.0
      %1083 = vmatprep.subr.mxu0 0.0
      %1084 = vmatpush1.msra.mxu0 0.0
      %1085 = vmatprep.subr.mxu0 0.0
      %1086 = vmatpush1.msra.mxu0 0.0
      %1087 = vmatprep.subr.mxu0 0.0
      %1088 = vmatpush1.msra.mxu0 0.0
      %1089 = vmatprep.subr.mxu0 0.0
      %1090 = vmatpush1.msra.mxu0 0.0
      %1091 = vmatprep.subr.mxu0 0.0
      %1092 = vmatpush1.msra.mxu0 0.0
      %1093 = vmatprep.subr.mxu0 0.0
      %1094 = vmatpush1.msra.mxu0 0.0
      %1095 = vmatprep.subr.mxu0 0.0
      %1096 = vmatpush1.msra.mxu0 0.0
      %1097 = vmatprep.subr.mxu0 0.0
      %1098 = vmatpush1.msra.mxu0 0.0
      %1099 = vmatprep.subr.mxu0 0.0
      %1100 = vmatpush1.msra.mxu0 0.0
      %1101 = vmatprep.subr.mxu0 0.0
      %1102 = vmatpush1.msra.mxu0 0.0
      %1103 = vmatprep.subr.mxu0 0.0
      %1104 = vmatpush1.msra.mxu0 0.0
      %1105 = vmatprep.subr.mxu0 0.0
      %1106 = vmatpush1.msra.mxu0 0.0
      %1107 = vmatprep.subr.mxu0 0.0
      %1108 = vmatpush1.msra.mxu0 0.0
      %1109 = vmatprep.subr.mxu0 0.0
      %1110 = vmatpush1.msra.mxu0 0.0
      %1111 = vmatprep.subr.mxu0 0.0
      %1112 = vmatpush1.msra.mxu0 0.0
      %1113 = vmatprep.mubr.f32.mxu0 0.0
      %1114 = vmatmul.mubr.f32.gmra.mrb[0].mxu0 %v1026
      %v1115 = vpop.f32.mrb[0].mxu0
      %v1116 = vadd.f32 0.0, %v1115
      %v1117 = vpop.f32.mrb[0].mxu0
      %1118 = vmatprep.mubr.f32.mxu0 0.0
      %1119 = vmatmul.mubr.f32.gmra.mrb[0].mxu0 %v1029
      %v1120 = vpop.f32.mrb[0].mxu0
      %v1121 = vadd.f32 0.0, %v1120
      %v1122 = vpop.f32.mrb[0].mxu0
      %1123 = vmatprep.mubr.f32.mxu0 0.0
      %1124 = vmatmul.mubr.f32.gmra.mrb[0].mxu0 %v1032
      %v1125 = vpop.f32.mrb[0].mxu0
      %v1126 = vadd.f32 0.0, %v1125
      %v1127 = vpop.f32.mrb[0].mxu0
      %1128 = vmatprep.mubr.f32.mxu0 0.0
      %1129 = vmatmul.mubr.f32.gmra.mrb[0].mxu0 %v1035
      %v1130 = vpop.f32.mrb[0].mxu0
      %v1131 = vadd.f32 0.0, %v1130
      %v1132 = vpop.f32.mrb[0].mxu0
      %1133 = vmatprep.mubr.f32.mxu0 0.0
      %1134 = vmatmul.mubr.f32.gmra.mrb[0].mxu0 %v1038
      %v1135 = vpop.f32.mrb[0].mxu0
      %v1136 = vadd.f32 0.0, %v1135
      %v1137 = vpop.f32.mrb[0].mxu0
      %1138 = vmatprep.mubr.f32.mxu0 0.0
      %1139 = vmatmul.mubr.f32.gmra.mrb[0].mxu0 %v1041
      %v1140 = vpop.f32.mrb[0].mxu0
      %v1141 = vadd.f32 0.0, %v1140
      %v1142 = vpop.f32.mrb[0].mxu0
      %1143 = vmatprep.mubr.f32.mxu0 0.0
      %1144 = vmatmul.mubr.f32.gmra.mrb[0].mxu0 %v1044
      %v1145 = vpop.f32.mrb[0].mxu0
      %v1146 = vadd.f32 0.0, %v1145
      %v1147 = vpop.f32.mrb[0].mxu0
      %1148 = vmatprep.mubr.f32.mxu0 0.0
      %1149 = vmatmul.mubr.f32.gmra.mrb[0].mxu0 %v1047
      %v1150 = vpop.f32.mrb[0].mxu0
      %v1151 = vadd.f32 0.0, %v1150
      %v1152 = vpop.f32.mrb[0].mxu0
      %1153 = vdwg.mxu0
      %v1162 = vunpack.c.l.b16 %v1009
      %v1163 = vunpack.c.l.b16 %v1010
      %v1164 = vunpack.c.l.b16 %v1011
      %v1165 = vunpack.c.l.b16 %v1012
      %v1166 = vunpack.c.l.b16 %v1013
      %v1167 = vunpack.c.l.b16 %v1014
      %v1168 = vunpack.c.l.b16 %v1015
      %v1169 = vunpack.c.l.b16 %v1016
      %v1170 = vpack.c.b16 %v1163, %v1162
      %v1171 = vpack.c.b16 %v1165, %v1164
      %v1172 = vpack.c.b16 %v1167, %v1166
      %v1173 = vpack.c.b16 %v1169, %v1168
      %v1183 = vunpack.c.l.b16 %v442
      %v1184 = vunpack.c.l.b16 %v443
      %v1185 = vunpack.c.l.b16 %v444
      %v1186 = vunpack.c.l.b16 %v445
      %v1187 = vunpack.c.l.b16 %v446
      %v1188 = vunpack.c.l.b16 %v447
      %v1189 = vunpack.c.l.b16 %v448
      %v1190 = vunpack.c.l.b16 %v449
      %v1191 = vunpack.c.l.b16 %v450
      %v1192 = vpack.c.b16 %v1184, %v1183
      %v1193 = vpack.c.b16 %v1186, %v1185
      %v1194 = vpack.c.b16 %v1188, %v1187
      %v1195 = vpack.c.b16 %v1190, %v1189
      %v1196 = vpack.c.b16 %v1191, %v1191
      %vm1201 = vcmask 588800
      %v1203 = vsel %vm1201, %v1170, 0
      %v1206 = vsel %vm1201, %v1171, 0
      %v1209 = vsel %vm1201, %v1172, 0
      %v1212 = vsel %vm1201, %v1173, 0
      %vm1214 = vcmask 1043456
      %v1216 = vsel %vm1214, %v1196, 0
      %1218 = vmatprep.subr.bf16.mxu0 0
      %1219 = vmatpush1.bf16.msra.mxu0 %v1192
      %1220 = vmatprep.subr.bf16.mxu0 0
      %1221 = vmatpush1.bf16.msra.mxu0 %v1193
      %1222 = vmatprep.subr.bf16.mxu0 0
      %1223 = vmatpush1.bf16.msra.mxu0 %v1194
      %1224 = vmatprep.subr.bf16.mxu0 0
      %1225 = vmatpush1.bf16.msra.mxu0 %v1195
      %1226 = vmatprep.subr.bf16.mxu0 0
      %1227 = vmatpush1.bf16.msra.mxu0 %v1216
      %1228 = vmatprep.subr.bf16.mxu0 0
      %1229 = vmatpush1.bf16.msra.mxu0 0
      %1230 = vmatprep.subr.bf16.mxu0 0
      %1231 = vmatpush1.bf16.msra.mxu0 0
      %1232 = vmatprep.subr.bf16.mxu0 0
      %1233 = vmatpush1.bf16.msra.mxu0 0
      %1234 = vmatprep.subr.bf16.mxu0 0
      %1235 = vmatpush1.bf16.msra.mxu0 0
      %1236 = vmatprep.subr.bf16.mxu0 0
      %1237 = vmatpush1.bf16.msra.mxu0 0
      %1238 = vmatprep.subr.bf16.mxu0 0
      %1239 = vmatpush1.bf16.msra.mxu0 0
      %1240 = vmatprep.subr.bf16.mxu0 0
      %1241 = vmatpush1.bf16.msra.mxu0 0
      %1242 = vmatprep.subr.bf16.mxu0 0
      %1243 = vmatpush1.bf16.msra.mxu0 0
      %1244 = vmatprep.subr.bf16.mxu0 0
      %1245 = vmatpush1.bf16.msra.mxu0 0
      %1246 = vmatprep.subr.bf16.mxu0 0
      %1247 = vmatpush1.bf16.msra.mxu0 0
      %1248 = vmatprep.subr.bf16.mxu0 0
      %1249 = vmatpush1.bf16.msra.mxu0 0
      %1250 = vmatprep.mubr.bf16.mxu0 0
      %1251 = vmatmul.mubr.bf16.gmra.mrb[0].mxu0 %v1203
      %v1252 = vpop.f32.mrb[0].mxu0
      %v1253 = vadd.f32 %v1116, %v1252
      %v1254 = vpop.f32.mrb[0].mxu0
      %v1255 = vpop.f32.mrb[0].mxu0
      %v1256 = vadd.f32 %v1121, %v1255
      %v1257 = vpop.f32.mrb[0].mxu0
      %1258 = vmatprep.mubr.bf16.mxu0 0
      %1259 = vmatmul.mubr.bf16.gmra.mrb[0].mxu0 %v1206
      %v1260 = vpop.f32.mrb[0].mxu0
      %v1261 = vadd.f32 %v1126, %v1260
      %v1262 = vpop.f32.mrb[0].mxu0
      %v1263 = vpop.f32.mrb[0].mxu0
      %v1264 = vadd.f32 %v1131, %v1263
      %v1265 = vpop.f32.mrb[0].mxu0
      %1266 = vmatprep.mubr.bf16.mxu0 0
      %1267 = vmatmul.mubr.bf16.gmra.mrb[0].mxu0 %v1209
      %v1268 = vpop.f32.mrb[0].mxu0
      %v1269 = vadd.f32 %v1136, %v1268
      %v1270 = vpop.f32.mrb[0].mxu0
      %v1271 = vpop.f32.mrb[0].mxu0
      %v1272 = vadd.f32 %v1141, %v1271
      %v1273 = vpop.f32.mrb[0].mxu0
      %1274 = vmatprep.mubr.bf16.mxu0 0
      %1275 = vmatmul.mubr.bf16.gmra.mrb[0].mxu0 %v1212
      %v1276 = vpop.f32.mrb[0].mxu0
      %v1277 = vadd.f32 %v1146, %v1276
      %v1278 = vpop.f32.mrb[0].mxu0
      %v1279 = vpop.f32.mrb[0].mxu0
      %v1280 = vadd.f32 %v1151, %v1279
      %v1281 = vpop.f32.mrb[0].mxu0
      %1282 = vdwg.mxu0
      %v1283 = vld [vmem:[%s5] sm:$0xf]
      %v1284 = vld [vmem:[%s5 + $0x4] sm:$0xf]
      %v1285 = vld [vmem:[%s5 + $0x8] sm:$0xf]
      %v1286 = vld [vmem:[%s5 + $0xc] sm:$0xf]
      %v1287 = vld [vmem:[%s5 + $0x10] sm:$0xf]
      %v1288 = vld [vmem:[%s5 + $0x14] sm:$0xf]
      %v1289 = vld [vmem:[%s5 + $0x18] sm:$0xf]
      %v1290 = vld [vmem:[%s5 + $0x1c] sm:$0xf]
      %v1299 = vunpack.c.l.b16 %v1283
      %v1300 = vunpack.c.l.b16 %v1284
      %v1301 = vunpack.c.l.b16 %v1285
      %v1302 = vunpack.c.l.b16 %v1286
      %v1303 = vunpack.c.l.b16 %v1287
      %v1304 = vunpack.c.l.b16 %v1288
      %v1305 = vunpack.c.l.b16 %v1289
      %v1306 = vunpack.c.l.b16 %v1290
      %v1307 = vpack.c.b16 %v1300, %v1299
      %v1308 = vpack.c.b16 %v1302, %v1301
      %v1309 = vpack.c.b16 %v1304, %v1303
      %v1310 = vpack.c.b16 %v1306, %v1305
      %vm1311 = vcmask 228352
      %v1313 = vsel %vm1311, %v1307, 0
      %v1316 = vsel %vm1311, %v1308, 0
      %v1319 = vsel %vm1311, %v1309, 0
      %v1322 = vsel %vm1311, %v1310, 0
      %vm1324 = vcmask 1045504
      %v1326 = vsel %vm1324, %v991, 0
      %1328 = vmatprep.subr.bf16.mxu0 0
      %1329 = vmatpush1.bf16.msra.mxu0 %v990
      %1330 = vmatprep.subr.bf16.mxu0 0
      %1331 = vmatpush1.bf16.msra.mxu0 %v1326
      %1332 = vmatprep.subr.bf16.mxu0 0
      %1333 = vmatpush1.bf16.msra.mxu0 0
      %1334 = vmatprep.subr.bf16.mxu0 0
      %1335 = vmatpush1.bf16.msra.mxu0 0
      %1336 = vmatprep.subr.bf16.mxu0 0
      %1337 = vmatpush1.bf16.msra.mxu0 0
      %1338 = vmatprep.subr.bf16.mxu0 0
      %1339 = vmatpush1.bf16.msra.mxu0 0
      %1340 = vmatprep.subr.bf16.mxu0 0
      %1341 = vmatpush1.bf16.msra.mxu0 0
      %1342 = vmatprep.subr.bf16.mxu0 0
      %1343 = vmatpush1.bf16.msra.mxu0 0
      %1344 = vmatprep.subr.bf16.mxu0 0
      %1345 = vmatpush1.bf16.msra.mxu0 0
      %1346 = vmatprep.subr.bf16.mxu0 0
      %1347 = vmatpush1.bf16.msra.mxu0 0
      %1348 = vmatprep.subr.bf16.mxu0 0
      %1349 = vmatpush1.bf16.msra.mxu0 0
      %1350 = vmatprep.subr.bf16.mxu0 0
      %1351 = vmatpush1.bf16.msra.mxu0 0
      %1352 = vmatprep.subr.bf16.mxu0 0
      %1353 = vmatpush1.bf16.msra.mxu0 0
      %1354 = vmatprep.subr.bf16.mxu0 0
      %1355 = vmatpush1.bf16.msra.mxu0 0
      %1356 = vmatprep.subr.bf16.mxu0 0
      %1357 = vmatpush1.bf16.msra.mxu0 0
      %1358 = vmatprep.subr.bf16.mxu0 0
      %1359 = vmatpush1.bf16.msra.mxu0 0
      %1360 = vmatprep.mubr.bf16.mxu0 0
      %1361 = vmatmul.mubr.bf16.gmra.mrb[0].mxu0 %v1313
      %v1362 = vpop.f32.mrb[0].mxu0
      %v1363 = vadd.f32 0.0, %v1362
      %v1364 = vpop.f32.mrb[0].mxu0
      %v1365 = vpop.f32.mrb[0].mxu0
      %v1366 = vadd.f32 0.0, %v1365
      %v1367 = vpop.f32.mrb[0].mxu0
      %1368 = vmatprep.mubr.bf16.mxu0 0
      %1369 = vmatmul.mubr.bf16.gmra.mrb[0].mxu0 %v1316
      %v1370 = vpop.f32.mrb[0].mxu0
      %v1371 = vadd.f32 0.0, %v1370
      %v1372 = vpop.f32.mrb[0].mxu0
      %v1373 = vpop.f32.mrb[0].mxu0
      %v1374 = vadd.f32 0.0, %v1373
      %v1375 = vpop.f32.mrb[0].mxu0
      %1376 = vmatprep.mubr.bf16.mxu0 0
      %1377 = vmatmul.mubr.bf16.gmra.mrb[0].mxu0 %v1319
      %v1378 = vpop.f32.mrb[0].mxu0
      %v1379 = vadd.f32 0.0, %v1378
      %v1380 = vpop.f32.mrb[0].mxu0
      %v1381 = vpop.f32.mrb[0].mxu0
      %v1382 = vadd.f32 0.0, %v1381
      %v1383 = vpop.f32.mrb[0].mxu0
      %1384 = vmatprep.mubr.bf16.mxu0 0
      %1385 = vmatmul.mubr.bf16.gmra.mrb[0].mxu0 %v1322
      %v1386 = vpop.f32.mrb[0].mxu0
      %v1387 = vadd.f32 0.0, %v1386
      %v1388 = vpop.f32.mrb[0].mxu0
      %v1389 = vpop.f32.mrb[0].mxu0
      %v1390 = vadd.f32 0.0, %v1389
      %v1391 = vpop.f32.mrb[0].mxu0
      %1392 = vdwg.mxu0
      %v1393 = vadd.f32 %v1253, %v1363
      %v1394 = vadd.f32 %v1256, %v1366
      %v1395 = vadd.f32 %v1261, %v1371
      %v1396 = vadd.f32 %v1264, %v1374
      %v1397 = vadd.f32 %v1269, %v1379
      %v1398 = vadd.f32 %v1272, %v1382
      %v1399 = vadd.f32 %v1277, %v1387
      %v1400 = vadd.f32 %v1280, %v1390
      %1402 = vset.pattern.permute.xlu0 0
      %1403 = vperm.xlu0 %1402, %v992
      %v1404 = vpop.permute.xlu0 %1403
      %1407 = vset.pattern.permute.xlu0 0
      %1408 = vperm.xlu0 %1407, %v993
      %v1409 = vpop.permute.xlu0 %1408
      %1412 = vset.pattern.permute.xlu0 0
      %1413 = vperm.xlu0 %1412, %v994
      %v1414 = vpop.permute.xlu0 %1413
      %1417 = vset.pattern.permute.xlu0 0
      %1418 = vperm.xlu0 %1417, %v995
      %v1419 = vpop.permute.xlu0 %1418
      %1422 = vset.pattern.permute.xlu0 0
      %1423 = vperm.xlu0 %1422, %v996
      %v1424 = vpop.permute.xlu0 %1423
      %1427 = vset.pattern.permute.xlu0 0
      %1428 = vperm.xlu0 %1427, %v997
      %v1429 = vpop.permute.xlu0 %1428
      %1432 = vset.pattern.permute.xlu0 0
      %1433 = vperm.xlu0 %1432, %v998
      %v1434 = vpop.permute.xlu0 %1433
      %1437 = vset.pattern.permute.xlu0 0
      %1438 = vperm.xlu0 %1437, %v999
      %v1439 = vpop.permute.xlu0 %1438
      %v1441 = vadd.f32 %v1393, %v1404
      %v1442 = vadd.f32 %v1394, %v1409
      %v1443 = vadd.f32 %v1395, %v1414
      %v1444 = vadd.f32 %v1396, %v1419
      %v1445 = vadd.f32 %v1397, %v1424
      %v1446 = vadd.f32 %v1398, %v1429
      %v1447 = vadd.f32 %v1399, %v1434
      %v1448 = vadd.f32 %v1400, %v1439
      %v1449 = vmax.f32 %v1441, 0.0
      %v1450 = vmax.f32 %v1442, 0.0
      %v1451 = vmax.f32 %v1443, 0.0
      %v1452 = vmax.f32 %v1444, 0.0
      %v1453 = vmax.f32 %v1445, 0.0
      %v1454 = vmax.f32 %v1446, 0.0
      %v1455 = vmax.f32 %v1447, 0.0
      %v1456 = vmax.f32 %v1448, 0.0
      %v1457 = vld [vmem:[%s6] sm:$0xf]
      %v1458 = vld [vmem:[%s6 + $0x4] sm:$0xf]
      %v1459 = vld [vmem:[%s6 + $0x8] sm:$0xf]
      %v1460 = vld [vmem:[%s6 + $0xc] sm:$0xf]
      %v1461 = vld [vmem:[%s6 + $0x10] sm:$0xf]
      %v1462 = vld [vmem:[%s6 + $0x14] sm:$0xf]
      %v1463 = vld [vmem:[%s6 + $0x18] sm:$0xf]
      %v1464 = vld [vmem:[%s6 + $0x1c] sm:$0xf]
      %v1465 = vpack.c.bf16 %v1450, %v1449
      %v1466 = vpack.c.bf16 %v1452, %v1451
      %v1467 = vpack.c.bf16 %v1454, %v1453
      %v1468 = vpack.c.bf16 %v1456, %v1455
      %v1469 = vld [vmem:[%s7] sm:$0xff]
      %v1470 = vld [vmem:[%s7 + $0x8] sm:$0xff]
      %v1471 = vld [vmem:[%s7 + $0x10] sm:$0xff]
      %v1472 = vld [vmem:[%s7 + $0x18] sm:$0xff]
      %v1473 = vld [vmem:[%s7 + $0x20] sm:$0xff]
      %v1474 = vld [vmem:[%s7 + $0x28] sm:$0xff]
      %v1475 = vld [vmem:[%s7 + $0x30] sm:$0xff]
      %v1476 = vld [vmem:[%s7 + $0x38] sm:$0xff]
      %v1478 = vsel %vm476, %v1469, 0
      %v1481 = vsel %vm476, %v1470, 0
      %v1484 = vsel %vm476, %v1471, 0
      %v1487 = vsel %vm476, %v1472, 0
      %v1490 = vsel %vm476, %v1473, 0
      %v1493 = vsel %vm476, %v1474, 0
      %v1496 = vsel %vm476, %v1475, 0
      %v1499 = vsel %vm476, %v1476, 0
      %1501 = vmatprep.subr.mxu0 0.0
      %1502 = vmatpush1.msra.mxu0 %v487
      %1503 = vmatprep.subr.mxu0 0.0
      %1504 = vmatpush1.msra.mxu0 0.0
      %1505 = vmatprep.subr.mxu0 0.0
      %1506 = vmatpush1.msra.mxu0 0.0
      %1507 = vmatprep.subr.mxu0 0.0
      %1508 = vmatpush1.msra.mxu0 0.0
      %1509 = vmatprep.subr.mxu0 0.0
      %1510 = vmatpush1.msra.mxu0 0.0
      %1511 = vmatprep.subr.mxu0 0.0
      %1512 = vmatpush1.msra.mxu0 0.0
      %1513 = vmatprep.subr.mxu0 0.0
      %1514 = vmatpush1.msra.mxu0 0.0
      %1515 = vmatprep.subr.mxu0 0.0
      %1516 = vmatpush1.msra.mxu0 0.0
      %1517 = vmatprep.subr.mxu0 0.0
      %1518 = vmatpush1.msra.mxu0 0.0
      %1519 = vmatprep.subr.mxu0 0.0
      %1520 = vmatpush1.msra.mxu0 0.0
      %1521 = vmatprep.subr.mxu0 0.0
      %1522 = vmatpush1.msra.mxu0 0.0
      %1523 = vmatprep.subr.mxu0 0.0
      %1524 = vmatpush1.msra.mxu0 0.0
      %1525 = vmatprep.subr.mxu0 0.0
      %1526 = vmatpush1.msra.mxu0 0.0
      %1527 = vmatprep.subr.mxu0 0.0
      %1528 = vmatpush1.msra.mxu0 0.0
      %1529 = vmatprep.subr.mxu0 0.0
      %1530 = vmatpush1.msra.mxu0 0.0
      %1531 = vmatprep.subr.mxu0 0.0
      %1532 = vmatpush1.msra.mxu0 0.0
      %1533 = vmatprep.subr.mxu0 0.0
      %1534 = vmatpush1.msra.mxu0 0.0
      %1535 = vmatprep.subr.mxu0 0.0
      %1536 = vmatpush1.msra.mxu0 0.0
      %1537 = vmatprep.subr.mxu0 0.0
      %1538 = vmatpush1.msra.mxu0 0.0
      %1539 = vmatprep.subr.mxu0 0.0
      %1540 = vmatpush1.msra.mxu0 0.0
      %1541 = vmatprep.subr.mxu0 0.0
      %1542 = vmatpush1.msra.mxu0 0.0
      %1543 = vmatprep.subr.mxu0 0.0
      %1544 = vmatpush1.msra.mxu0 0.0
      %1545 = vmatprep.subr.mxu0 0.0
      %1546 = vmatpush1.msra.mxu0 0.0
      %1547 = vmatprep.subr.mxu0 0.0
      %1548 = vmatpush1.msra.mxu0 0.0
      %1549 = vmatprep.subr.mxu0 0.0
      %1550 = vmatpush1.msra.mxu0 0.0
      %1551 = vmatprep.subr.mxu0 0.0
      %1552 = vmatpush1.msra.mxu0 0.0
      %1553 = vmatprep.subr.mxu0 0.0
      %1554 = vmatpush1.msra.mxu0 0.0
      %1555 = vmatprep.subr.mxu0 0.0
      %1556 = vmatpush1.msra.mxu0 0.0
      %1557 = vmatprep.subr.mxu0 0.0
      %1558 = vmatpush1.msra.mxu0 0.0
      %1559 = vmatprep.subr.mxu0 0.0
      %1560 = vmatpush1.msra.mxu0 0.0
      %1561 = vmatprep.subr.mxu0 0.0
      %1562 = vmatpush1.msra.mxu0 0.0
      %1563 = vmatprep.subr.mxu0 0.0
      %1564 = vmatpush1.msra.mxu0 0.0
      %1565 = vmatprep.mubr.f32.mxu0 0.0
      %1566 = vmatmul.mubr.f32.gmra.mrb[0].mxu0 %v1478
      %v1567 = vpop.f32.mrb[0].mxu0
      %v1568 = vadd.f32 0.0, %v1567
      %v1569 = vpop.f32.mrb[0].mxu0
      %1570 = vmatprep.mubr.f32.mxu0 0.0
      %1571 = vmatmul.mubr.f32.gmra.mrb[0].mxu0 %v1481
      %v1572 = vpop.f32.mrb[0].mxu0
      %v1573 = vadd.f32 0.0, %v1572
      %v1574 = vpop.f32.mrb[0].mxu0
      %1575 = vmatprep.mubr.f32.mxu0 0.0
      %1576 = vmatmul.mubr.f32.gmra.mrb[0].mxu0 %v1484
      %v1577 = vpop.f32.mrb[0].mxu0
      %v1578 = vadd.f32 0.0, %v1577
      %v1579 = vpop.f32.mrb[0].mxu0
      %1580 = vmatprep.mubr.f32.mxu0 0.0
      %1581 = vmatmul.mubr.f32.gmra.mrb[0].mxu0 %v1487
      %v1582 = vpop.f32.mrb[0].mxu0
      %v1583 = vadd.f32 0.0, %v1582
      %v1584 = vpop.f32.mrb[0].mxu0
      %1585 = vmatprep.mubr.f32.mxu0 0.0
      %1586 = vmatmul.mubr.f32.gmra.mrb[0].mxu0 %v1490
      %v1587 = vpop.f32.mrb[0].mxu0
      %v1588 = vadd.f32 0.0, %v1587
      %v1589 = vpop.f32.mrb[0].mxu0
      %1590 = vmatprep.mubr.f32.mxu0 0.0
      %1591 = vmatmul.mubr.f32.gmra.mrb[0].mxu0 %v1493
      %v1592 = vpop.f32.mrb[0].mxu0
      %v1593 = vadd.f32 0.0, %v1592
      %v1594 = vpop.f32.mrb[0].mxu0
      %1595 = vmatprep.mubr.f32.mxu0 0.0
      %1596 = vmatmul.mubr.f32.gmra.mrb[0].mxu0 %v1496
      %v1597 = vpop.f32.mrb[0].mxu0
      %v1598 = vadd.f32 0.0, %v1597
      %v1599 = vpop.f32.mrb[0].mxu0
      %1600 = vmatprep.mubr.f32.mxu0 0.0
      %1601 = vmatmul.mubr.f32.gmra.mrb[0].mxu0 %v1499
      %v1602 = vpop.f32.mrb[0].mxu0
      %v1603 = vadd.f32 0.0, %v1602
      %v1604 = vpop.f32.mrb[0].mxu0
      %1605 = vdwg.mxu0
      %v1614 = vunpack.c.l.b16 %v1457
      %v1615 = vunpack.c.l.b16 %v1458
      %v1616 = vunpack.c.l.b16 %v1459
      %v1617 = vunpack.c.l.b16 %v1460
      %v1618 = vunpack.c.l.b16 %v1461
      %v1619 = vunpack.c.l.b16 %v1462
      %v1620 = vunpack.c.l.b16 %v1463
      %v1621 = vunpack.c.l.b16 %v1464
      %v1622 = vpack.c.b16 %v1615, %v1614
      %v1623 = vpack.c.b16 %v1617, %v1616
      %v1624 = vpack.c.b16 %v1619, %v1618
      %v1625 = vpack.c.b16 %v1621, %v1620
      %vm1626 = vcmask 523264
      %v1628 = vsel %vm1626, %v1622, 0
      %v1631 = vsel %vm1626, %v1623, 0
      %v1634 = vsel %vm1626, %v1624, 0
      %v1637 = vsel %vm1626, %v1625, 0
      %1639 = vmatprep.subr.bf16.mxu0 0
      %1640 = vmatpush1.bf16.msra.mxu0 %v1465
      %1641 = vmatprep.subr.bf16.mxu0 0
      %1642 = vmatpush1.bf16.msra.mxu0 %v1466
      %1643 = vmatprep.subr.bf16.mxu0 0
      %1644 = vmatpush1.bf16.msra.mxu0 %v1467
      %1645 = vmatprep.subr.bf16.mxu0 0
      %1646 = vmatpush1.bf16.msra.mxu0 %v1468
      %1647 = vmatprep.subr.bf16.mxu0 0
      %1648 = vmatpush1.bf16.msra.mxu0 0
      %1649 = vmatprep.subr.bf16.mxu0 0
      %1650 = vmatpush1.bf16.msra.mxu0 0
      %1651 = vmatprep.subr.bf16.mxu0 0
      %1652 = vmatpush1.bf16.msra.mxu0 0
      %1653 = vmatprep.subr.bf16.mxu0 0
      %1654 = vmatpush1.bf16.msra.mxu0 0
      %1655 = vmatprep.subr.bf16.mxu0 0
      %1656 = vmatpush1.bf16.msra.mxu0 0
      %1657 = vmatprep.subr.bf16.mxu0 0
      %1658 = vmatpush1.bf16.msra.mxu0 0
      %1659 = vmatprep.subr.bf16.mxu0 0
      %1660 = vmatpush1.bf16.msra.mxu0 0
      %1661 = vmatprep.subr.bf16.mxu0 0
      %1662 = vmatpush1.bf16.msra.mxu0 0
      %1663 = vmatprep.subr.bf16.mxu0 0
      %1664 = vmatpush1.bf16.msra.mxu0 0
      %1665 = vmatprep.subr.bf16.mxu0 0
      %1666 = vmatpush1.bf16.msra.mxu0 0
      %1667 = vmatprep.subr.bf16.mxu0 0
      %1668 = vmatpush1.bf16.msra.mxu0 0
      %1669 = vmatprep.subr.bf16.mxu0 0
      %1670 = vmatpush1.bf16.msra.mxu0 0
      %1671 = vmatprep.mubr.bf16.mxu0 0
      %1672 = vmatmul.mubr.bf16.gmra.mrb[0].mxu0 %v1628
      %v1673 = vpop.f32.mrb[0].mxu0
      %v1674 = vadd.f32 %v1568, %v1673
      %v1675 = vpop.f32.mrb[0].mxu0
      %v1676 = vpop.f32.mrb[0].mxu0
      %v1677 = vadd.f32 %v1573, %v1676
      %v1678 = vpop.f32.mrb[0].mxu0
      %1679 = vmatprep.mubr.bf16.mxu0 0
      %1680 = vmatmul.mubr.bf16.gmra.mrb[0].mxu0 %v1631
      %v1681 = vpop.f32.mrb[0].mxu0
      %v1682 = vadd.f32 %v1578, %v1681
      %v1683 = vpop.f32.mrb[0].mxu0
      %v1684 = vpop.f32.mrb[0].mxu0
      %v1685 = vadd.f32 %v1583, %v1684
      %v1686 = vpop.f32.mrb[0].mxu0
      %1687 = vmatprep.mubr.bf16.mxu0 0
      %1688 = vmatmul.mubr.bf16.gmra.mrb[0].mxu0 %v1634
      %v1689 = vpop.f32.mrb[0].mxu0
      %v1690 = vadd.f32 %v1588, %v1689
      %v1691 = vpop.f32.mrb[0].mxu0
      %v1692 = vpop.f32.mrb[0].mxu0
      %v1693 = vadd.f32 %v1593, %v1692
      %v1694 = vpop.f32.mrb[0].mxu0
      %1695 = vmatprep.mubr.bf16.mxu0 0
      %1696 = vmatmul.mubr.bf16.gmra.mrb[0].mxu0 %v1637
      %v1697 = vpop.f32.mrb[0].mxu0
      %v1698 = vadd.f32 %v1598, %v1697
      %v1699 = vpop.f32.mrb[0].mxu0
      %v1700 = vpop.f32.mrb[0].mxu0
      %v1701 = vadd.f32 %v1603, %v1700
      %v1702 = vpop.f32.mrb[0].mxu0
      %1703 = vdwg.mxu0
      %v1704 = vld [vmem:[%s8] sm:$0xf]
      %v1705 = vld [vmem:[%s8 + $0x4] sm:$0xf]
      %v1706 = vld [vmem:[%s8 + $0x8] sm:$0xf]
      %v1707 = vld [vmem:[%s8 + $0xc] sm:$0xf]
      %v1708 = vld [vmem:[%s8 + $0x10] sm:$0xf]
      %v1709 = vld [vmem:[%s8 + $0x14] sm:$0xf]
      %v1710 = vld [vmem:[%s8 + $0x18] sm:$0xf]
      %v1711 = vld [vmem:[%s8 + $0x1c] sm:$0xf]
      %v1720 = vunpack.c.l.b16 %v1704
      %v1721 = vunpack.c.l.b16 %v1705
      %v1722 = vunpack.c.l.b16 %v1706
      %v1723 = vunpack.c.l.b16 %v1707
      %v1724 = vunpack.c.l.b16 %v1708
      %v1725 = vunpack.c.l.b16 %v1709
      %v1726 = vunpack.c.l.b16 %v1710
      %v1727 = vunpack.c.l.b16 %v1711
      %v1728 = vpack.c.b16 %v1721, %v1720
      %v1729 = vpack.c.b16 %v1723, %v1722
      %v1730 = vpack.c.b16 %v1725, %v1724
      %v1731 = vpack.c.b16 %v1727, %v1726
      %v1733 = vsel %vm1311, %v1728, 0
      %v1736 = vsel %vm1311, %v1729, 0
      %v1739 = vsel %vm1311, %v1730, 0
      %v1742 = vsel %vm1311, %v1731, 0
      %1744 = vmatprep.subr.bf16.mxu0 0
      %1745 = vmatpush1.bf16.msra.mxu0 %v990
      %1746 = vmatprep.subr.bf16.mxu0 0
      %1747 = vmatpush1.bf16.msra.mxu0 %v1326
      %1748 = vmatprep.subr.bf16.mxu0 0
      %1749 = vmatpush1.bf16.msra.mxu0 0
      %1750 = vmatprep.subr.bf16.mxu0 0
      %1751 = vmatpush1.bf16.msra.mxu0 0
      %1752 = vmatprep.subr.bf16.mxu0 0
      %1753 = vmatpush1.bf16.msra.mxu0 0
      %1754 = vmatprep.subr.bf16.mxu0 0
      %1755 = vmatpush1.bf16.msra.mxu0 0
      %1756 = vmatprep.subr.bf16.mxu0 0
      %1757 = vmatpush1.bf16.msra.mxu0 0
      %1758 = vmatprep.subr.bf16.mxu0 0
      %1759 = vmatpush1.bf16.msra.mxu0 0
      %1760 = vmatprep.subr.bf16.mxu0 0
      %1761 = vmatpush1.bf16.msra.mxu0 0
      %1762 = vmatprep.subr.bf16.mxu0 0
      %1763 = vmatpush1.bf16.msra.mxu0 0
      %1764 = vmatprep.subr.bf16.mxu0 0
      %1765 = vmatpush1.bf16.msra.mxu0 0
      %1766 = vmatprep.subr.bf16.mxu0 0
      %1767 = vmatpush1.bf16.msra.mxu0 0
      %1768 = vmatprep.subr.bf16.mxu0 0
      %1769 = vmatpush1.bf16.msra.mxu0 0
      %1770 = vmatprep.subr.bf16.mxu0 0
      %1771 = vmatpush1.bf16.msra.mxu0 0
      %1772 = vmatprep.subr.bf16.mxu0 0
      %1773 = vmatpush1.bf16.msra.mxu0 0
      %1774 = vmatprep.subr.bf16.mxu0 0
      %1775 = vmatpush1.bf16.msra.mxu0 0
      %1776 = vmatprep.mubr.bf16.mxu0 0
      %1777 = vmatmul.mubr.bf16.gmra.mrb[0].mxu0 %v1733
      %v1778 = vpop.f32.mrb[0].mxu0
      %v1779 = vadd.f32 0.0, %v1778
      %v1780 = vpop.f32.mrb[0].mxu0
      %v1781 = vpop.f32.mrb[0].mxu0
      %v1782 = vadd.f32 0.0, %v1781
      %v1783 = vpop.f32.mrb[0].mxu0
      %1784 = vmatprep.mubr.bf16.mxu0 0
      %1785 = vmatmul.mubr.bf16.gmra.mrb[0].mxu0 %v1736
      %v1786 = vpop.f32.mrb[0].mxu0
      %v1787 = vadd.f32 0.0, %v1786
      %v1788 = vpop.f32.mrb[0].mxu0
      %v1789 = vpop.f32.mrb[0].mxu0
      %v1790 = vadd.f32 0.0, %v1789
      %v1791 = vpop.f32.mrb[0].mxu0
      %1792 = vmatprep.mubr.bf16.mxu0 0
      %1793 = vmatmul.mubr.bf16.gmra.mrb[0].mxu0 %v1739
      %v1794 = vpop.f32.mrb[0].mxu0
      %v1795 = vadd.f32 0.0, %v1794
      %v1796 = vpop.f32.mrb[0].mxu0
      %v1797 = vpop.f32.mrb[0].mxu0
      %v1798 = vadd.f32 0.0, %v1797
      %v1799 = vpop.f32.mrb[0].mxu0
      %1800 = vmatprep.mubr.bf16.mxu0 0
      %1801 = vmatmul.mubr.bf16.gmra.mrb[0].mxu0 %v1742
      %v1802 = vpop.f32.mrb[0].mxu0
      %v1803 = vadd.f32 0.0, %v1802
      %v1804 = vpop.f32.mrb[0].mxu0
      %v1805 = vpop.f32.mrb[0].mxu0
      %v1806 = vadd.f32 0.0, %v1805
      %v1807 = vpop.f32.mrb[0].mxu0
      %1808 = vdwg.mxu0
      %v1809 = vadd.f32 %v1674, %v1779
      %v1810 = vadd.f32 %v1677, %v1782
      %v1811 = vadd.f32 %v1682, %v1787
      %v1812 = vadd.f32 %v1685, %v1790
      %v1813 = vadd.f32 %v1690, %v1795
      %v1814 = vadd.f32 %v1693, %v1798
      %v1815 = vadd.f32 %v1698, %v1803
      %v1816 = vadd.f32 %v1701, %v1806
      %1818 = vset.pattern.permute.xlu0 0
      %1819 = vperm.xlu0 %1818, %v1000
      %v1820 = vpop.permute.xlu0 %1819
      %1823 = vset.pattern.permute.xlu0 0
      %1824 = vperm.xlu0 %1823, %v1001
      %v1825 = vpop.permute.xlu0 %1824
      %1828 = vset.pattern.permute.xlu0 0
      %1829 = vperm.xlu0 %1828, %v1002
      %v1830 = vpop.permute.xlu0 %1829
      %1833 = vset.pattern.permute.xlu0 0
      %1834 = vperm.xlu0 %1833, %v1003
      %v1835 = vpop.permute.xlu0 %1834
      %1838 = vset.pattern.permute.xlu0 0
      %1839 = vperm.xlu0 %1838, %v1004
      %v1840 = vpop.permute.xlu0 %1839
      %1843 = vset.pattern.permute.xlu0 0
      %1844 = vperm.xlu0 %1843, %v1005
      %v1845 = vpop.permute.xlu0 %1844
      %1848 = vset.pattern.permute.xlu0 0
      %1849 = vperm.xlu0 %1848, %v1006
      %v1850 = vpop.permute.xlu0 %1849
      %1853 = vset.pattern.permute.xlu0 0
      %1854 = vperm.xlu0 %1853, %v1007
      %v1855 = vpop.permute.xlu0 %1854
      %v1857 = vadd.f32 %v1809, %v1820
      %v1858 = vadd.f32 %v1810, %v1825
      %v1859 = vadd.f32 %v1811, %v1830
      %v1860 = vadd.f32 %v1812, %v1835
      %v1861 = vadd.f32 %v1813, %v1840
      %v1862 = vadd.f32 %v1814, %v1845
      %v1863 = vadd.f32 %v1815, %v1850
      %v1864 = vadd.f32 %v1816, %v1855
      %v1865 = vmax.f32 %v1857, 0.0
      %v1866 = vmax.f32 %v1858, 0.0
      %v1867 = vmax.f32 %v1859, 0.0
      %v1868 = vmax.f32 %v1860, 0.0
      %v1869 = vmax.f32 %v1861, 0.0
      %v1870 = vmax.f32 %v1862, 0.0
      %v1871 = vmax.f32 %v1863, 0.0
      %v1872 = vmax.f32 %v1864, 0.0
      %v1873 = vld [vmem:[%s9] sm:$0xff]
      %1875 = vset.pattern.permute.xlu0 0
      %1876 = vperm.xlu0 %1875, %v1008
      %v1877 = vpop.permute.xlu0 %1876
      %v1880 = vsel %vm1626, %v1873, 0
      %1882 = vmatprep.subr.mxu0 0.0
      %1883 = vmatpush1.msra.mxu0 %v1865
      %1884 = vmatprep.subr.mxu0 0.0
      %1885 = vmatpush1.msra.mxu0 %v1866
      %1886 = vmatprep.subr.mxu0 0.0
      %1887 = vmatpush1.msra.mxu0 %v1867
      %1888 = vmatprep.subr.mxu0 0.0
      %1889 = vmatpush1.msra.mxu0 %v1868
      %1890 = vmatprep.subr.mxu0 0.0
      %1891 = vmatpush1.msra.mxu0 %v1869
      %1892 = vmatprep.subr.mxu0 0.0
      %1893 = vmatpush1.msra.mxu0 %v1870
      %1894 = vmatprep.subr.mxu0 0.0
      %1895 = vmatpush1.msra.mxu0 %v1871
      %1896 = vmatprep.subr.mxu0 0.0
      %1897 = vmatpush1.msra.mxu0 %v1872
      %1898 = vmatprep.subr.mxu0 0.0
      %1899 = vmatpush1.msra.mxu0 0.0
      %1900 = vmatprep.subr.mxu0 0.0
      %1901 = vmatpush1.msra.mxu0 0.0
      %1902 = vmatprep.subr.mxu0 0.0
      %1903 = vmatpush1.msra.mxu0 0.0
      %1904 = vmatprep.subr.mxu0 0.0
      %1905 = vmatpush1.msra.mxu0 0.0
      %1906 = vmatprep.subr.mxu0 0.0
      %1907 = vmatpush1.msra.mxu0 0.0
      %1908 = vmatprep.subr.mxu0 0.0
      %1909 = vmatpush1.msra.mxu0 0.0
      %1910 = vmatprep.subr.mxu0 0.0
      %1911 = vmatpush1.msra.mxu0 0.0
      %1912 = vmatprep.subr.mxu0 0.0
      %1913 = vmatpush1.msra.mxu0 0.0
      %1914 = vmatprep.subr.mxu0 0.0
      %1915 = vmatpush1.msra.mxu0 0.0
      %1916 = vmatprep.subr.mxu0 0.0
      %1917 = vmatpush1.msra.mxu0 0.0
      %1918 = vmatprep.subr.mxu0 0.0
      %1919 = vmatpush1.msra.mxu0 0.0
      %1920 = vmatprep.subr.mxu0 0.0
      %1921 = vmatpush1.msra.mxu0 0.0
      %1922 = vmatprep.subr.mxu0 0.0
      %1923 = vmatpush1.msra.mxu0 0.0
      %1924 = vmatprep.subr.mxu0 0.0
      %1925 = vmatpush1.msra.mxu0 0.0
      %1926 = vmatprep.subr.mxu0 0.0
      %1927 = vmatpush1.msra.mxu0 0.0
      %1928 = vmatprep.subr.mxu0 0.0
      %1929 = vmatpush1.msra.mxu0 0.0
      %1930 = vmatprep.subr.mxu0 0.0
      %1931 = vmatpush1.msra.mxu0 0.0
      %1932 = vmatprep.subr.mxu0 0.0
      %1933 = vmatpush1.msra.mxu0 0.0
      %1934 = vmatprep.subr.mxu0 0.0
      %1935 = vmatpush1.msra.mxu0 0.0
      %1936 = vmatprep.subr.mxu0 0.0
      %1937 = vmatpush1.msra.mxu0 0.0
      %1938 = vmatprep.subr.mxu0 0.0
      %1939 = vmatpush1.msra.mxu0 0.0
      %1940 = vmatprep.subr.mxu0 0.0
      %1941 = vmatpush1.msra.mxu0 0.0
      %1942 = vmatprep.subr.mxu0 0.0
      %1943 = vmatpush1.msra.mxu0 0.0
      %1944 = vmatprep.subr.mxu0 0.0
      %1945 = vmatpush1.msra.mxu0 0.0
      %1946 = vmatprep.mubr.f32.mxu0 0.0
      %1947 = vmatmul.mubr.f32.gmra.mrb[0].mxu0 %v1880
      %v1948 = vpop.f32.mrb[0].mxu0
      %v1949 = vadd.f32 %v1877, %v1948
      %v1950 = vpop.f32.mrb[0].mxu0
      %1951 = vdwg.mxu0
      %v1952 = vld [vmem:[#allocation2] sm:$0xff]
      %v1953 = vlaneseq
      %v1954 = vshrl.u32 %v1953, 7
      %v1955 = vsub.s32 2, %v1954
      %v1956 = vrot.slane %v451, %v1955
      %v1957 = vmul.f32 %v1949, %v1956
      %v1958 = vadd.f32 %v1952, %v1957
      %1959 = vst [vmem:[#allocation2] sm:$0xff] %v1958
      %p1960 = scmp.eq.s32.totalorder %s27, 3
      // Predicated region
      $region69: #{ultrasr_forward.3} parent=63 // pred_check
        %p1961 = pneg %p1960
      $region70: #{ultrasr_forward.3} parent=63 // pred_check_branch
        %1963 = sbr.rel (%p1961) target = $region72
      $region71: #{ultrasr_forward.3} parent=63 // pred_region
        %v1964 = vld [vmem:[#allocation2] sm:$0xff]
        %1965 = vst [vmem:[%s435] sm:$0xff] %v1964
      $region72: #{ultrasr_forward.3} parent=63 // pred_fallthru
        _
      %p1966 = scmp.lt.s32.totalorder %s26, 0
      %s1967 = scalar_select %p1966, %s26, 0
      %s1968 = smul.addr %s1967, 8
      %s1969 = scalar_lea.vmem %s11, %s1968
      // Predicated region
      $region73: #{ultrasr_forward.3} parent=63 // pred_check
        %p1970 = pneg %p297
      $region74: #{ultrasr_forward.3} parent=63 // pred_check_branch
        %1972 = sbr.rel (%p1970) target = $region76
      $region75: #{ultrasr_forward.3} parent=63 // pred_region
        _
      $region76: #{ultrasr_forward.3} parent=63 // pred_fallthru
        _
      // Predicated region
      $region77: #{ultrasr_forward.3} parent=63 // pred_check
        %p1973 = pneg %p297
      $region78: #{ultrasr_forward.3} parent=63 // pred_check_branch
        %1975 = sbr.rel (%p1973) target = $region80
      $region79: #{ultrasr_forward.3} parent=63 // pred_region
        %p1976 = scmp.lt.s32.totalorder %s26, 0
        %s1977 = scalar_select %p1976, %s26, 0
        %s1978 = smul.addr %s1977, 8
        %s1979 = scalar_lea.vmem %s11, %s1978
      $region80: #{ultrasr_forward.3} parent=63 // pred_fallthru
        _
    $region64: #{ultrasr_forward.3} parent=5 // pred_fallthru
      _
    %p1980 = scmp.le.s32.totalorder 2, %s17
    // Predicated region
    $region81: #{ultrasr_forward.3} parent=5 // pred_check
      %p1981 = pneg %p1980
    $region82: #{ultrasr_forward.3} parent=5 // pred_check_branch
      %1983 = sbr.rel (%p1981) target = $region84
    $region83: #{ultrasr_forward.3} parent=5 // pred_region
      %s1984 = ssub.s32 %s17, 2
    $region84: #{ultrasr_forward.3} parent=5 // pred_fallthru
      _
  $region6: #{ultrasr_forward.3} parent=0 // loop_footer
    %s21 = sadd.s32 1, %s17
  $region7: #{ultrasr_forward.3} parent=0 // loop_footer_branch
    %16 = sbr.rel target = $region3
  $region8: #{ultrasr_forward.3} parent=0 // loop_exit
    _

</llo_original>
